<compile_context>
chip_gen: v6e
topology: v6e:2x2x1
jax: 0.10.0
libtpu: 0.0.40
codegen_flags: <defaults>
</compile_context>

<pallas_src>
import functools

import jax
import jax.numpy as jnp
import numpy as np
from jax.experimental import pallas as pl
from jax.experimental.pallas import tpu as pltpu


def _round_up(x, m):
    return ((x + m - 1) // m) * m


def _shift_w(v, off):
    """out[..., x, :] = v[..., x+off, :], zero-filled at the W edges (SAME pad)."""
    if off == 0:
        return v
    R, Wo, C = v.shape
    zeros = jnp.zeros((R, 1, C), v.dtype)
    if off == 1:
        return jnp.concatenate([v[:, 1:, :], zeros], axis=1)
    return jnp.concatenate([zeros, v[:, :-1, :]], axis=1)


def _im2col_3x3_rows_valid(v):
    """(R, Wo, C) -> ((R-2)*Wo, 9*C): 3x3 patches, VALID along rows, SAME along W.

    Output row j*Wo+x is the patch centred at (row j+1, col x).  Tap order is
    dy-major / dx / channel-minor, matching w.reshape(9*C, Cout) for HWIO weights.
    With C a multiple of 128 the lane-axis concat is vreg-aligned.
    """
    R, Wo, C = v.shape
    taps = []
    for dy in (-1, 0, 1):
        vr = jax.lax.slice_in_dim(v, 1 + dy, R - 1 + dy, axis=0)   # (R-2, Wo, C)
        for dx in (-1, 0, 1):
            taps.append(_shift_w(vr, dx))
    slab = jnp.concatenate(taps, axis=-1)                          # (R-2, Wo, 9*C)
    return slab.reshape((R - 2) * Wo, 9 * C)


def down_kernel(x_ref, w1_ref, b1_ref, w2_ref, b2_ref, o_ref, *,
                n_strips, strip_rows, Ho):
    """One (image, row-strip) per grid step.

    x_ref : (Sr+4, 2, Wo, 2*Cp_in)  raw-input strip incl. 2-pooled-row halo each
                                    side, 2x2 pool windows pre-grouped (wrapper)
    w1_ref: (9*Cp_in, Cp_mid)       conv1 weights (BN1 scale folded), bf16
    b1_ref: (1, Cp_mid)             BN1 shift, f32
    w2_ref: (9*Cp_mid, Cp_out)      conv2 weights (BN2 scale folded), bf16
    b2_ref: (1, Cp_out)             BN2 shift, f32
    o_ref : (Sr*Wo, Cp_out)         flattened, lane-dense output strip
    """
    Sr = strip_rows
    _, _, Wo, two_cin = x_ref.shape
    cp_in = two_cin // 2
    cp_mid = w1_ref.shape[-1]

    s = pl.program_id(0) % n_strips          # strip index inside the image
    row0 = s * Sr                            # first real output row of this strip

    # ---- MaxPool2d(2): row-pair max, then column-pair max (128-aligned halves) ----
    r0 = x_ref[:, 0, :, :]
    r1 = x_ref[:, 1, :, :]
    vmax = jnp.maximum(r0, r1)                                     # (Sr+4, Wo, 2*Cp_in)
    pooled = jnp.maximum(vmax[:, :, :cp_in], vmax[:, :, cp_in:])   # (Sr+4, Wo, Cp_in)

    # ---- Conv1 (3x3 SAME, BN1 folded) + shift + ReLU for rows [row0-1, row0+Sr+1) ----
    slab1 = _im2col_3x3_rows_valid(pooled)                         # ((Sr+2)*Wo, 9*Cp_in)
    y1 = jnp.dot(slab1.astype(jnp.bfloat16), w1_ref[...],
                 preferred_element_type=jnp.float32)
    y1 = jnp.maximum(y1 + b1_ref[...], 0.0)                        # ((Sr+2)*Wo, Cp_mid)

    # Conv2's zero padding: y1 halo rows outside the real image must be zero.
    y1 = y1.reshape(Sr + 2, Wo, cp_mid)
    gidx = (row0 - 1) + jax.lax.broadcasted_iota(jnp.int32, (Sr + 2, 1, 1), 0)
    y1 = jnp.where((gidx >= 0) & (gidx < Ho), y1, 0.0)

    # ---- Conv2 (3x3 SAME, BN2 folded) + shift + ReLU for the strip's Sr rows --------
    slab2 = _im2col_3x3_rows_valid(y1)                             # (Sr*Wo, 9*Cp_mid)
    y2 = jnp.dot(slab2.astype(jnp.bfloat16), w2_ref[...],
                 preferred_element_type=jnp.float32)
    y2 = jnp.maximum(y2 + b2_ref[...], 0.0)

    o_ref[...] = y2.astype(o_ref.dtype)


def _pick_strip_rows(Ho, Wo, cp_in, cp_mid, cp_out, budget_bytes=20 * 1024 * 1024):
    """Largest divisor of Ho whose per-strip working set fits the VMEM budget,
    preferring >=2 strips (pipeline depth / second v7x TensorCore when N is small)."""
    def est(sr):
        inp = 2 * (sr + 4) * 2 * Wo * 2 * cp_in * 4        # double-buffered input block
        pooled = (sr + 4) * Wo * cp_in * 4
        slab1 = (sr + 2) * Wo * 9 * cp_in * 6               # f32 slab + bf16 copy
        y1 = (sr + 2) * Wo * cp_mid * 4
        slab2 = sr * Wo * 9 * cp_mid * 6
        outb = 3 * sr * Wo * cp_out * 4                      # y2 + double-buffered out
        wts = 9 * cp_in * cp_mid * 2 + 9 * cp_mid * cp_out * 2
        return inp + pooled + slab1 + y1 + slab2 + outb + wts

    divisors = sorted((d for d in range(1, Ho + 1) if Ho % d == 0), reverse=True)
    fits = [d for d in divisors if est(d) <= budget_bytes]
    if not fits:
        return divisors[-1]
    for d in fits:
        if Ho // d >= 2:
            return d
    return fits[0]


@jax.jit
def down_forward(x_nchw, w1, s1, b1, w2, s2, b2):
    """Down.forward: x (N, C_in, H, W) -> (N, C_out, H/2, W/2)."""
    N, C_in, H, W = x_nchw.shape
    C_mid = w1.shape[-1]
    C_out = w2.shape[-1]
    Ho, Wo = H // 2, W // 2

    cp_in = _round_up(C_in, 128)
    cp_mid = _round_up(C_mid, 128)
    cp_out = _round_up(C_out, 128)

    # Fold BN scale into conv weights, pad channels to 128-multiples, collapse the
    # 3x3 taps into the contracting dim, cast to bf16 (f32 accumulation in-kernel).
    def prep(w, s, b, ci, co, ci_p, co_p):
        wf = w * s.reshape(1, 1, 1, co)
        wf = jnp.pad(wf, ((0, 0), (0, 0), (0, ci_p - ci), (0, co_p - co)))
        wf = wf.reshape(9 * ci_p, co_p).astype(jnp.bfloat16)
        bf = jnp.pad(b.astype(jnp.float32), ((0, 0), (0, co_p - co)))
        return wf, bf

    w1f, b1f = prep(w1, s1, b1, C_in, C_mid, cp_in, cp_mid)
    w2f, b2f = prep(w2, s2, b2, C_mid, C_out, cp_mid, cp_out)

    strip_rows = _pick_strip_rows(Ho, Wo, cp_in, cp_mid, cp_out)
    n_strips = Ho // strip_rows

    # NCHW -> NHWC, pad channels to cp_in, add a 2-pooled-row (4 raw rows) zero halo
    # along H, group the 2x2 pool window into (.., 2, Wo, 2*cp_in), then gather the
    # overlapping row-strips so each grid step reads a non-overlapping block.
    x = jnp.transpose(x_nchw, (0, 2, 3, 1))
    x = jnp.pad(x, ((0, 0), (4, 4), (0, 0), (0, cp_in - C_in)))
    x = x.reshape(N, Ho + 4, 2, Wo, 2, cp_in).reshape(N, Ho + 4, 2, Wo, 2 * cp_in)
    xs = jnp.stack(
        [x[:, s * strip_rows: s * strip_rows + strip_rows + 4]
         for s in range(n_strips)], axis=1)
    xs = xs.reshape(N * n_strips, strip_rows + 4, 2, Wo, 2 * cp_in)

    kernel = functools.partial(down_kernel, n_strips=n_strips,
                               strip_rows=strip_rows, Ho=Ho)

    flops = 2 * N * Ho * Wo * 9 * (cp_in * cp_mid + cp_mid * cp_out)
    bytes_accessed = (xs.size * 4 + w1f.size * 2 + w2f.size * 2
                      + (b1f.size + b2f.size) * 4 + N * Ho * Wo * cp_out * 4)

    out = pl.pallas_call(
        kernel,
        out_shape=jax.ShapeDtypeStruct((N * n_strips, strip_rows * Wo, cp_out),
                                       x_nchw.dtype),
        grid=(N * n_strips,),
        in_specs=[
            pl.BlockSpec((None, strip_rows + 4, 2, Wo, 2 * cp_in),
                         lambda g: (g, 0, 0, 0, 0)),
            pl.BlockSpec((9 * cp_in, cp_mid), lambda g: (0, 0)),
            pl.BlockSpec((1, cp_mid), lambda g: (0, 0)),
            pl.BlockSpec((9 * cp_mid, cp_out), lambda g: (0, 0)),
            pl.BlockSpec((1, cp_out), lambda g: (0, 0)),
        ],
        out_specs=pl.BlockSpec((None, strip_rows * Wo, cp_out), lambda g: (g, 0, 0)),
        compiler_params=pltpu.CompilerParams(
            dimension_semantics=("parallel",),
            vmem_limit_bytes=40 * 1024 * 1024),
        cost_estimate=pl.CostEstimate(flops=flops, transcendentals=0,
                                      bytes_accessed=bytes_accessed),
    )(xs, w1f, b1f, w2f, b2f)

    out = out.reshape(N, Ho, Wo, cp_out)[..., :C_out]
    return jnp.transpose(out, (0, 3, 1, 2))  # NHWC -> NCHW


def reference_forward(x_nchw, w1, s1, b1, w2, s2, b2):
    """Pure-JAX (XLA) reference with identical semantics, NHWC internally."""
    x = jnp.transpose(x_nchw, (0, 2, 3, 1))
    p = jax.lax.reduce_window(x, -jnp.inf, jax.lax.max,
                              (1, 2, 2, 1), (1, 2, 2, 1), "VALID")
    dn = ("NHWC", "HWIO", "NHWC")
    y = jax.lax.conv_general_dilated(p, w1, (1, 1), "SAME",
                                     dimension_numbers=dn,
                                     precision=jax.lax.Precision.HIGHEST)
    y = jnp.maximum(y * s1.reshape(1, 1, 1, -1) + b1.reshape(1, 1, 1, -1), 0.0)
    y = jax.lax.conv_general_dilated(y, w2, (1, 1), "SAME",
                                     dimension_numbers=dn,
                                     precision=jax.lax.Precision.HIGHEST)
    y = jnp.maximum(y * s2.reshape(1, 1, 1, -1) + b2.reshape(1, 1, 1, -1), 0.0)
    return jnp.transpose(y, (0, 3, 1, 2))


def make_params(key, c_in, c_out):
    """Deterministic synthetic parameters. mid_channels = out_channels."""
    c_mid = c_out
    eps = 1e-5
    ks = jax.random.split(key, 10)

    w1 = 0.1 * jax.random.normal(ks[0], (3, 3, c_in, c_mid), jnp.float32)
    g1 = 1.0 + 0.1 * jax.random.normal(ks[1], (c_mid,), jnp.float32)
    be1 = 0.1 * jax.random.normal(ks[2], (c_mid,), jnp.float32)
    m1 = 0.05 * jax.random.normal(ks[3], (c_mid,), jnp.float32)
    v1 = 0.5 + jnp.abs(jax.random.normal(ks[4], (c_mid,), jnp.float32))

    w2 = 0.1 * jax.random.normal(ks[5], (3, 3, c_mid, c_out), jnp.float32)
    g2 = 1.0 + 0.1 * jax.random.normal(ks[6], (c_out,), jnp.float32)
    be2 = 0.1 * jax.random.normal(ks[7], (c_out,), jnp.float32)
    m2 = 0.05 * jax.random.normal(ks[8], (c_out,), jnp.float32)
    v2 = 0.5 + jnp.abs(jax.random.normal(ks[9], (c_out,), jnp.float32))

    s1 = g1 / jnp.sqrt(v1 + eps)
    b1 = be1 - m1 * s1
    s2 = g2 / jnp.sqrt(v2 + eps)
    b2 = be2 - m2 * s2
    return (w1, s1.reshape(1, c_mid), b1.reshape(1, c_mid),
            w2, s2.reshape(1, c_out), b2.reshape(1, c_out))


if __name__ == "__main__":
    N, C_IN, C_OUT, H, W = 2, 4, 8, 16, 16

    key = jax.random.PRNGKey(0)
    kx, kp = jax.random.split(key)
    x = jax.random.normal(kx, (N, C_IN, H, W), jnp.float32)
    w1, s1, b1, w2, s2, b2 = make_params(kp, C_IN, C_OUT)

    out = jax.block_until_ready(down_forward(x, w1, s1, b1, w2, s2, b2))
    ref = jax.block_until_ready(reference_forward(x, w1, s1, b1, w2, s2, b2))

    assert out.shape == (N, C_OUT, H // 2, W // 2), out.shape
    # bf16 MXU matmuls (f32 accumulation) vs. Precision.HIGHEST reference.
    np.testing.assert_allclose(np.asarray(out), np.asarray(ref),
                               rtol=3e-2, atol=3e-2)
    print("KERNEL_OK")
</pallas_src>

<mosaic_0001>
module attributes {stable_mosaic.version = 11 : i64} {
  func.func @down_kernel(%arg0: i32, %arg1: memref<1x8x2x8x256xf32, #tpu.memory_space<vmem>>, %arg2: memref<1152x128xbf16, #tpu.memory_space<vmem>>, %arg3: memref<1x128xf32, #tpu.memory_space<vmem>>, %arg4: memref<1152x128xbf16, #tpu.memory_space<vmem>>, %arg5: memref<1x128xf32, #tpu.memory_space<vmem>>, %arg6: memref<1x32x128xf32, #tpu.memory_space<vmem>>) attributes {dimension_semantics = [#tpu.dimension_semantics<parallel>], iteration_bounds = array<i64: 4>, scalar_prefetch = 0 : i64, scratch_operands = 0 : i64, tpu.core_type = #tpu.core_type<tc>, window_params = [{transform_indices = @transform_0, window_bounds = array<i64: 1, 8, 2, 8, 256>}, {pipeline_mode = #tpu.pipeline_mode<synchronous>, transform_indices = @transform_1, window_bounds = array<i64: 1152, 128>}, {pipeline_mode = #tpu.pipeline_mode<synchronous>, transform_indices = @transform_2, window_bounds = array<i64: 1, 128>}, {pipeline_mode = #tpu.pipeline_mode<synchronous>, transform_indices = @transform_3, window_bounds = array<i64: 1152, 128>}, {pipeline_mode = #tpu.pipeline_mode<synchronous>, transform_indices = @transform_4, window_bounds = array<i64: 1, 128>}, {transform_indices = @transform_5, window_bounds = array<i64: 1, 32, 128>}]} {
    %c2_i32 = arith.constant 2 : i32
    %c0_i32 = arith.constant 0 : i32
    %0 = arith.cmpi eq, %c2_i32, %c0_i32 : i32
    %c1_i32 = arith.constant 1 : i32
    %1 = arith.select %0, %c1_i32, %c2_i32 : i32
    %2 = arith.remsi %arg0, %1 : i32
    %c0_i32_0 = arith.constant 0 : i32
    %3 = arith.cmpi ne, %2, %c0_i32_0 : i32
    %c0_i32_1 = arith.constant 0 : i32
    %4 = arith.cmpi slt, %2, %c0_i32_1 : i32
    %c0_i32_2 = arith.constant 0 : i32
    %5 = arith.cmpi slt, %1, %c0_i32_2 : i32
    %6 = arith.xori %4, %5 : i1
    %7 = arith.andi %6, %3 : i1
    %8 = arith.addi %2, %1 : i32
    %9 = arith.select %7, %8, %2 : i32
    %c4_i32 = arith.constant 4 : i32
    %10 = arith.muli %9, %c4_i32 : i32
    %c0 = arith.constant 0 : index
    %c0_3 = arith.constant 0 : index
    %c0_4 = arith.constant 0 : index
    %c0_5 = arith.constant 0 : index
    %c0_6 = arith.constant 0 : index
    %11 = vector.load %arg1[%c0, %c0_3, %c0_4, %c0_5, %c0_6] : memref<1x8x2x8x256xf32, #tpu.memory_space<vmem>>, vector<1x8x1x8x256xf32>
    %12 = vector.shape_cast %11 : vector<1x8x1x8x256xf32> to vector<8x8x256xf32>
    %c0_7 = arith.constant 0 : index
    %c0_8 = arith.constant 0 : index
    %c1 = arith.constant 1 : index
    %c0_9 = arith.constant 0 : index
    %c0_10 = arith.constant 0 : index
    %13 = vector.load %arg1[%c0_7, %c0_8, %c1, %c0_9, %c0_10] : memref<1x8x2x8x256xf32, #tpu.memory_space<vmem>>, vector<1x8x1x8x256xf32>
    %14 = vector.shape_cast %13 : vector<1x8x1x8x256xf32> to vector<8x8x256xf32>
    %15 = arith.maximumf %12, %14 : vector<8x8x256xf32>
    %16 = vector.extract_strided_slice %15 {offsets = [0, 0, 0], sizes = [8, 8, 128], strides = [1, 1, 1]} : vector<8x8x256xf32> to vector<8x8x128xf32>
    %17 = vector.extract_strided_slice %15 {offsets = [0, 0, 128], sizes = [8, 8, 128], strides = [1, 1, 1]} : vector<8x8x256xf32> to vector<8x8x128xf32>
    %18 = arith.maximumf %16, %17 : vector<8x8x128xf32>
    %19 = vector.extract_strided_slice %18 {offsets = [0, 0, 0], sizes = [6, 8, 128], strides = [1, 1, 1]} : vector<8x8x128xf32> to vector<6x8x128xf32>
    %cst = arith.constant 0.000000e+00 : f32
    %20 = vector.broadcast %cst : f32 to vector<6x1x128xf32>
    %21 = vector.extract_strided_slice %19 {offsets = [0, 0, 0], sizes = [6, 7, 128], strides = [1, 1, 1]} : vector<6x8x128xf32> to vector<6x7x128xf32>
    %22 = tpu.concatenate %20, %21 in 1 : vector<6x1x128xf32>, vector<6x7x128xf32> -> vector<6x8x128xf32>
    %cst_11 = arith.constant 0.000000e+00 : f32
    %23 = vector.broadcast %cst_11 : f32 to vector<6x1x128xf32>
    %24 = vector.extract_strided_slice %19 {offsets = [0, 1, 0], sizes = [6, 7, 128], strides = [1, 1, 1]} : vector<6x8x128xf32> to vector<6x7x128xf32>
    %25 = tpu.concatenate %24, %23 in 1 : vector<6x7x128xf32>, vector<6x1x128xf32> -> vector<6x8x128xf32>
    %26 = vector.extract_strided_slice %18 {offsets = [1, 0, 0], sizes = [6, 8, 128], strides = [1, 1, 1]} : vector<8x8x128xf32> to vector<6x8x128xf32>
    %cst_12 = arith.constant 0.000000e+00 : f32
    %27 = vector.broadcast %cst_12 : f32 to vector<6x1x128xf32>
    %28 = vector.extract_strided_slice %26 {offsets = [0, 0, 0], sizes = [6, 7, 128], strides = [1, 1, 1]} : vector<6x8x128xf32> to vector<6x7x128xf32>
    %29 = tpu.concatenate %27, %28 in 1 : vector<6x1x128xf32>, vector<6x7x128xf32> -> vector<6x8x128xf32>
    %cst_13 = arith.constant 0.000000e+00 : f32
    %30 = vector.broadcast %cst_13 : f32 to vector<6x1x128xf32>
    %31 = vector.extract_strided_slice %26 {offsets = [0, 1, 0], sizes = [6, 7, 128], strides = [1, 1, 1]} : vector<6x8x128xf32> to vector<6x7x128xf32>
    %32 = tpu.concatenate %31, %30 in 1 : vector<6x7x128xf32>, vector<6x1x128xf32> -> vector<6x8x128xf32>
    %33 = vector.extract_strided_slice %18 {offsets = [2, 0, 0], sizes = [6, 8, 128], strides = [1, 1, 1]} : vector<8x8x128xf32> to vector<6x8x128xf32>
    %cst_14 = arith.constant 0.000000e+00 : f32
    %34 = vector.broadcast %cst_14 : f32 to vector<6x1x128xf32>
    %35 = vector.extract_strided_slice %33 {offsets = [0, 0, 0], sizes = [6, 7, 128], strides = [1, 1, 1]} : vector<6x8x128xf32> to vector<6x7x128xf32>
    %36 = tpu.concatenate %34, %35 in 1 : vector<6x1x128xf32>, vector<6x7x128xf32> -> vector<6x8x128xf32>
    %cst_15 = arith.constant 0.000000e+00 : f32
    %37 = vector.broadcast %cst_15 : f32 to vector<6x1x128xf32>
    %38 = vector.extract_strided_slice %33 {offsets = [0, 1, 0], sizes = [6, 7, 128], strides = [1, 1, 1]} : vector<6x8x128xf32> to vector<6x7x128xf32>
    %39 = tpu.concatenate %38, %37 in 1 : vector<6x7x128xf32>, vector<6x1x128xf32> -> vector<6x8x128xf32>
    %40 = tpu.concatenate %22, %19, %25, %29, %26, %32, %36, %33, %39 in 2 : vector<6x8x128xf32>, vector<6x8x128xf32>, vector<6x8x128xf32>, vector<6x8x128xf32>, vector<6x8x128xf32>, vector<6x8x128xf32>, vector<6x8x128xf32>, vector<6x8x128xf32>, vector<6x8x128xf32> -> vector<6x8x1152xf32>
    %41 = vector.shape_cast %40 : vector<6x8x1152xf32> to vector<48x1152xf32>
    %42 = arith.truncf %41 : vector<48x1152xf32> to vector<48x1152xbf16>
    %c0_16 = arith.constant 0 : index
    %c0_17 = arith.constant 0 : index
    %43 = vector.load %arg2[%c0_16, %c0_17] : memref<1152x128xbf16, #tpu.memory_space<vmem>>, vector<1152x128xbf16>
    %cst_18 = arith.constant dense<0.000000e+00> : vector<48x128xf32>
    %44 = tpu.matmul %42, %43, %cst_18 {dimension_numbers = #tpu.dot_dimension_numbers<[1], [0], [0], [1], [0, 0, 1, 1], [], []>} : vector<48x1152xbf16>, vector<1152x128xbf16>, vector<48x128xf32> -> vector<48x128xf32>
    %c0_19 = arith.constant 0 : index
    %c0_20 = arith.constant 0 : index
    %45 = vector.load %arg3[%c0_19, %c0_20] : memref<1x128xf32, #tpu.memory_space<vmem>>, vector<1x128xf32>
    %46 = vector.broadcast %45 : vector<1x128xf32> to vector<48x128xf32>
    %47 = arith.addf %44, %46 : vector<48x128xf32>
    %cst_21 = arith.constant 0.000000e+00 : f32
    %48 = vector.broadcast %cst_21 : f32 to vector<48x128xf32>
    %49 = arith.maximumf %47, %48 : vector<48x128xf32>
    %50 = vector.shape_cast %49 : vector<48x128xf32> to vector<6x8x128xf32>
    %c1_i32_22 = arith.constant 1 : i32
    %51 = arith.subi %10, %c1_i32_22 : i32
    %52 = tpu.iota {dimensions = array<i32: 0>} : vector<6x1x1xi32>
    %53 = vector.broadcast %51 : i32 to vector<6x1x1xi32>
    %54 = arith.addi %53, %52 : vector<6x1x1xi32>
    %c0_i32_23 = arith.constant 0 : i32
    %55 = vector.broadcast %c0_i32_23 : i32 to vector<6x1x1xi32>
    %56 = arith.cmpi sge, %54, %55 : vector<6x1x1xi32>
    %c8_i32 = arith.constant 8 : i32
    %57 = vector.broadcast %c8_i32 : i32 to vector<6x1x1xi32>
    %58 = arith.cmpi slt, %54, %57 : vector<6x1x1xi32>
    %59 = arith.andi %56, %58 : vector<6x1x1xi1>
    %cst_24 = arith.constant 0.000000e+00 : f32
    %60 = vector.shape_cast %59 : vector<6x1x1xi1> to vector<6x1x1xi1>
    %61 = vector.broadcast %60 : vector<6x1x1xi1> to vector<6x8x128xi1>
    %62 = vector.broadcast %cst_24 : f32 to vector<6x8x128xf32>
    %63 = arith.select %61, %50, %62 : vector<6x8x128xi1>, vector<6x8x128xf32>
    %64 = vector.extract_strided_slice %63 {offsets = [0, 0, 0], sizes = [4, 8, 128], strides = [1, 1, 1]} : vector<6x8x128xf32> to vector<4x8x128xf32>
    %cst_25 = arith.constant 0.000000e+00 : f32
    %65 = vector.broadcast %cst_25 : f32 to vector<4x1x128xf32>
    %66 = vector.extract_strided_slice %64 {offsets = [0, 0, 0], sizes = [4, 7, 128], strides = [1, 1, 1]} : vector<4x8x128xf32> to vector<4x7x128xf32>
    %67 = tpu.concatenate %65, %66 in 1 : vector<4x1x128xf32>, vector<4x7x128xf32> -> vector<4x8x128xf32>
    %cst_26 = arith.constant 0.000000e+00 : f32
    %68 = vector.broadcast %cst_26 : f32 to vector<4x1x128xf32>
    %69 = vector.extract_strided_slice %64 {offsets = [0, 1, 0], sizes = [4, 7, 128], strides = [1, 1, 1]} : vector<4x8x128xf32> to vector<4x7x128xf32>
    %70 = tpu.concatenate %69, %68 in 1 : vector<4x7x128xf32>, vector<4x1x128xf32> -> vector<4x8x128xf32>
    %71 = vector.extract_strided_slice %63 {offsets = [1, 0, 0], sizes = [4, 8, 128], strides = [1, 1, 1]} : vector<6x8x128xf32> to vector<4x8x128xf32>
    %cst_27 = arith.constant 0.000000e+00 : f32
    %72 = vector.broadcast %cst_27 : f32 to vector<4x1x128xf32>
    %73 = vector.extract_strided_slice %71 {offsets = [0, 0, 0], sizes = [4, 7, 128], strides = [1, 1, 1]} : vector<4x8x128xf32> to vector<4x7x128xf32>
    %74 = tpu.concatenate %72, %73 in 1 : vector<4x1x128xf32>, vector<4x7x128xf32> -> vector<4x8x128xf32>
    %cst_28 = arith.constant 0.000000e+00 : f32
    %75 = vector.broadcast %cst_28 : f32 to vector<4x1x128xf32>
    %76 = vector.extract_strided_slice %71 {offsets = [0, 1, 0], sizes = [4, 7, 128], strides = [1, 1, 1]} : vector<4x8x128xf32> to vector<4x7x128xf32>
    %77 = tpu.concatenate %76, %75 in 1 : vector<4x7x128xf32>, vector<4x1x128xf32> -> vector<4x8x128xf32>
    %78 = vector.extract_strided_slice %63 {offsets = [2, 0, 0], sizes = [4, 8, 128], strides = [1, 1, 1]} : vector<6x8x128xf32> to vector<4x8x128xf32>
    %cst_29 = arith.constant 0.000000e+00 : f32
    %79 = vector.broadcast %cst_29 : f32 to vector<4x1x128xf32>
    %80 = vector.extract_strided_slice %78 {offsets = [0, 0, 0], sizes = [4, 7, 128], strides = [1, 1, 1]} : vector<4x8x128xf32> to vector<4x7x128xf32>
    %81 = tpu.concatenate %79, %80 in 1 : vector<4x1x128xf32>, vector<4x7x128xf32> -> vector<4x8x128xf32>
    %cst_30 = arith.constant 0.000000e+00 : f32
    %82 = vector.broadcast %cst_30 : f32 to vector<4x1x128xf32>
    %83 = vector.extract_strided_slice %78 {offsets = [0, 1, 0], sizes = [4, 7, 128], strides = [1, 1, 1]} : vector<4x8x128xf32> to vector<4x7x128xf32>
    %84 = tpu.concatenate %83, %82 in 1 : vector<4x7x128xf32>, vector<4x1x128xf32> -> vector<4x8x128xf32>
    %85 = tpu.concatenate %67, %64, %70, %74, %71, %77, %81, %78, %84 in 2 : vector<4x8x128xf32>, vector<4x8x128xf32>, vector<4x8x128xf32>, vector<4x8x128xf32>, vector<4x8x128xf32>, vector<4x8x128xf32>, vector<4x8x128xf32>, vector<4x8x128xf32>, vector<4x8x128xf32> -> vector<4x8x1152xf32>
    %86 = vector.shape_cast %85 : vector<4x8x1152xf32> to vector<32x1152xf32>
    %87 = arith.truncf %86 : vector<32x1152xf32> to vector<32x1152xbf16>
    %c0_31 = arith.constant 0 : index
    %c0_32 = arith.constant 0 : index
    %88 = vector.load %arg4[%c0_31, %c0_32] : memref<1152x128xbf16, #tpu.memory_space<vmem>>, vector<1152x128xbf16>
    %cst_33 = arith.constant dense<0.000000e+00> : vector<32x128xf32>
    %89 = tpu.matmul %87, %88, %cst_33 {dimension_numbers = #tpu.dot_dimension_numbers<[1], [0], [0], [1], [0, 0, 1, 1], [], []>} : vector<32x1152xbf16>, vector<1152x128xbf16>, vector<32x128xf32> -> vector<32x128xf32>
    %c0_34 = arith.constant 0 : index
    %c0_35 = arith.constant 0 : index
    %90 = vector.load %arg5[%c0_34, %c0_35] : memref<1x128xf32, #tpu.memory_space<vmem>>, vector<1x128xf32>
    %91 = vector.broadcast %90 : vector<1x128xf32> to vector<32x128xf32>
    %92 = arith.addf %89, %91 : vector<32x128xf32>
    %cst_36 = arith.constant 0.000000e+00 : f32
    %93 = vector.broadcast %cst_36 : f32 to vector<32x128xf32>
    %94 = arith.maximumf %92, %93 : vector<32x128xf32>
    %c0_37 = arith.constant 0 : index
    %c0_38 = arith.constant 0 : index
    %c0_39 = arith.constant 0 : index
    %95 = vector.load %arg6[%c0_37, %c0_38, %c0_39] : memref<1x32x128xf32, #tpu.memory_space<vmem>>, vector<1x32x128xf32>
    %96 = vector.shape_cast %95 : vector<1x32x128xf32> to vector<32x128xf32>
    %97 = vector.shape_cast %94 : vector<32x128xf32> to vector<1x32x128xf32>
    tpu.vector_store %arg6[%c0_37, %c0_38, %c0_39], %97 {strides = array<i32>} : memref<1x32x128xf32, #tpu.memory_space<vmem>>, vector<1x32x128xf32>,
    return
  }
  func.func @transform_0(%arg0: i32) -> (i32, i32, i32, i32, i32) {
    %c0_i32 = arith.constant 0 : i32
    %c0_i32_0 = arith.constant 0 : i32
    %c0_i32_1 = arith.constant 0 : i32
    %c0_i32_2 = arith.constant 0 : i32
    %c0_i32_3 = arith.constant 0 : i32
    return %arg0, %c0_i32, %c0_i32_0, %c0_i32_1, %c0_i32_2 : i32, i32, i32, i32, i32
  }
  func.func @transform_1(%arg0: i32) -> (i32, i32) {
    %c0_i32 = arith.constant 0 : i32
    %c0_i32_0 = arith.constant 0 : i32
    %c0_i32_1 = arith.constant 0 : i32
    return %c0_i32, %c0_i32_0 : i32, i32
  }
  func.func @transform_2(%arg0: i32) -> (i32, i32) {
    %c0_i32 = arith.constant 0 : i32
    %c0_i32_0 = arith.constant 0 : i32
    %c0_i32_1 = arith.constant 0 : i32
    return %c0_i32, %c0_i32_0 : i32, i32
  }
  func.func @transform_3(%arg0: i32) -> (i32, i32) {
    %c0_i32 = arith.constant 0 : i32
    %c0_i32_0 = arith.constant 0 : i32
    %c0_i32_1 = arith.constant 0 : i32
    return %c0_i32, %c0_i32_0 : i32, i32
  }
  func.func @transform_4(%arg0: i32) -> (i32, i32) {
    %c0_i32 = arith.constant 0 : i32
    %c0_i32_0 = arith.constant 0 : i32
    %c0_i32_1 = arith.constant 0 : i32
    return %c0_i32, %c0_i32_0 : i32, i32
  }
  func.func @transform_5(%arg0: i32) -> (i32, i32, i32) {
    %c0_i32 = arith.constant 0 : i32
    %c0_i32_0 = arith.constant 0 : i32
    %c0_i32_1 = arith.constant 0 : i32
    return %arg0, %c0_i32, %c0_i32_0 : i32, i32, i32
  }
}

</mosaic_0001>

<llo_original>
// kernel: down_forward.1
$region0: #{down_forward.1}
  #allocation0 [shape = 'u32[]', space=smem, size = 0x4, offset = 0x4, fixed_abs, tag = 'smem constant byte address 0x4 - core index']
  #allocation1 [shape = 'u32[144,128]{1,0:T(1,128)}', space=vmem, size = 0x12000, scoped, tag = 'internal scratch']
  %s0 = inlined_call_operand.vmem [shape: f32[4,8,2,8,256], index: 0, kind: input, shape index: {}]
  %s1 = inlined_call_operand.vmem [shape: bf16[1152,128], index: 1, kind: input, shape index: {}]
  %s2 = inlined_call_operand.vmem [shape: f32[1,128], index: 2, kind: input, shape index: {}]
  %s3 = inlined_call_operand.vmem [shape: bf16[1152,128], index: 3, kind: input, shape index: {}]
  %s4 = inlined_call_operand.vmem [shape: f32[1,128], index: 4, kind: input, shape index: {}]
  %s5 = inlined_call_operand.vmem [shape: f32[4,32,128], index: 5, kind: output, shape index: {}]
  %s6 = sld [smem:[#allocation0]]
  $region53: #{down_forward.1} parent=0
    _
  %s8 = ssub.s32 1, %s6
  %s9 = scalar_select 0, %s8, %s6
  loop: start=0, step=1, limit=6
  $region2: #{down_forward.1} parent=0 // loop_pre_header
    _
  $region3: #{down_forward.1} parent=0 // loop_header
    %s11 = sphi 0, %s15
    %p12 = scmp.ge.s32.totalorder %s11, 6
    %s21 = sphi 0, %s23
    %s24 = sphi 0, %s21
    %s25 = sphi 0, %s24
    %s41 = sphi 0, %s25
    %s45 = sphi 0, %s45
    %s47 = sphi 0, %s45
    %s48 = sphi 0, %s47
    %s62 = sphi 0, %s48
    %s66 = sphi 0, %s66
    %s68 = sphi 0, %s66
    %s69 = sphi 0, %s68
    %s83 = sphi 0, %s69
    %s87 = sphi 0, %s87
    %s89 = sphi 0, %s87
    %s90 = sphi 0, %s89
    %s104 = sphi 0, %s90
    %s108 = sphi 0, %s108
    %s110 = sphi 0, %s108
    %s111 = sphi 0, %s110
    %s125 = sphi 0, %s111
    %s131 = sphi 0, %s133
    %s134 = sphi 0, %s131
    %s135 = sphi 0, %s134
    %s151 = sphi 0, %s135
  $region4: #{down_forward.1} parent=0 // loop_header_branch
    %14 = sbr.rel (%p12) target = $region8
  $region5: #{down_forward.1} parent=0 // loop_body
    %s16 = ssub.s32 %s11, 1
    %s17 = ssub.s32 %s11, 2
    %s18 = sadd.s32 %s11, 1
    %s19 = ssub.s32 %s11, %s18
    %p20 = scmp.eq.s32.totalorder %s19, 0
    %s22 = sadd.s32 %s21, 1
    %s23 = scalar_select %p20, %s21, %s22
    %p26 = pneg %p20
    %p27 = scmp.eq.s32.totalorder %s11, 3
    %p28 = por %p26, %p27
    %p29 = scmp.ne.s32.totalorder %s21, %s24
    %p30 = scmp.eq.s32.totalorder %s11, 0
    %p31 = por %p29, %p30
    %p32 = scmp.ne.s32.totalorder %s21, %s24
    %p33 = scmp.eq.s32.totalorder %s16, 3
    %p34 = por %p32, %p33
    %p35 = scmp.ne.s32.totalorder %s24, %s25
    %p36 = scmp.eq.s32.totalorder %s16, 0
    %p37 = por %p35, %p36
    %p38 = scmp.ne.s32.totalorder %s24, %s25
    %p39 = scmp.eq.s32.totalorder %s17, 3
    %p40 = por %p38, %p39
    %p42 = scmp.ne.s32.totalorder %s25, %s41
    %p43 = scmp.eq.s32.totalorder %s17, 0
    %p44 = por %p42, %p43
    %s46 = sadd.s32 %s45, 1
    %p49 = scmp.eq.s32.totalorder %s11, 3
    %p50 = scmp.ne.s32.totalorder %s45, %s47
    %p51 = scmp.eq.s32.totalorder %s11, 0
    %p52 = por %p50, %p51
    %p53 = scmp.ne.s32.totalorder %s45, %s47
    %p54 = scmp.eq.s32.totalorder %s16, 3
    %p55 = por %p53, %p54
    %p56 = scmp.ne.s32.totalorder %s47, %s48
    %p57 = scmp.eq.s32.totalorder %s16, 0
    %p58 = por %p56, %p57
    %p59 = scmp.ne.s32.totalorder %s47, %s48
    %p60 = scmp.eq.s32.totalorder %s17, 3
    %p61 = por %p59, %p60
    %p63 = scmp.ne.s32.totalorder %s48, %s62
    %p64 = scmp.eq.s32.totalorder %s17, 0
    %p65 = por %p63, %p64
    %s67 = sadd.s32 %s66, 1
    %p70 = scmp.eq.s32.totalorder %s11, 3
    %p71 = scmp.ne.s32.totalorder %s66, %s68
    %p72 = scmp.eq.s32.totalorder %s11, 0
    %p73 = por %p71, %p72
    %p74 = scmp.ne.s32.totalorder %s66, %s68
    %p75 = scmp.eq.s32.totalorder %s16, 3
    %p76 = por %p74, %p75
    %p77 = scmp.ne.s32.totalorder %s68, %s69
    %p78 = scmp.eq.s32.totalorder %s16, 0
    %p79 = por %p77, %p78
    %p80 = scmp.ne.s32.totalorder %s68, %s69
    %p81 = scmp.eq.s32.totalorder %s17, 3
    %p82 = por %p80, %p81
    %p84 = scmp.ne.s32.totalorder %s69, %s83
    %p85 = scmp.eq.s32.totalorder %s17, 0
    %p86 = por %p84, %p85
    %s88 = sadd.s32 %s87, 1
    %p91 = scmp.eq.s32.totalorder %s11, 3
    %p92 = scmp.ne.s32.totalorder %s87, %s89
    %p93 = scmp.eq.s32.totalorder %s11, 0
    %p94 = por %p92, %p93
    %p95 = scmp.ne.s32.totalorder %s87, %s89
    %p96 = scmp.eq.s32.totalorder %s16, 3
    %p97 = por %p95, %p96
    %p98 = scmp.ne.s32.totalorder %s89, %s90
    %p99 = scmp.eq.s32.totalorder %s16, 0
    %p100 = por %p98, %p99
    %p101 = scmp.ne.s32.totalorder %s89, %s90
    %p102 = scmp.eq.s32.totalorder %s17, 3
    %p103 = por %p101, %p102
    %p105 = scmp.ne.s32.totalorder %s90, %s104
    %p106 = scmp.eq.s32.totalorder %s17, 0
    %p107 = por %p105, %p106
    %s109 = sadd.s32 %s108, 1
    %p112 = scmp.eq.s32.totalorder %s11, 3
    %p113 = scmp.ne.s32.totalorder %s108, %s110
    %p114 = scmp.eq.s32.totalorder %s11, 0
    %p115 = por %p113, %p114
    %p116 = scmp.ne.s32.totalorder %s108, %s110
    %p117 = scmp.eq.s32.totalorder %s16, 3
    %p118 = por %p116, %p117
    %p119 = scmp.ne.s32.totalorder %s110, %s111
    %p120 = scmp.eq.s32.totalorder %s16, 0
    %p121 = por %p119, %p120
    %p122 = scmp.ne.s32.totalorder %s110, %s111
    %p123 = scmp.eq.s32.totalorder %s17, 3
    %p124 = por %p122, %p123
    %p126 = scmp.ne.s32.totalorder %s111, %s125
    %p127 = scmp.eq.s32.totalorder %s17, 0
    %p128 = por %p126, %p127
    %s129 = ssub.s32 %s11, %s18
    %p130 = scmp.eq.s32.totalorder %s129, 0
    %s132 = sadd.s32 %s131, 1
    %s133 = scalar_select %p130, %s131, %s132
    %p136 = pneg %p130
    %p137 = scmp.eq.s32.totalorder %s11, 3
    %p138 = por %p136, %p137
    %p139 = scmp.ne.s32.totalorder %s131, %s134
    %p140 = scmp.eq.s32.totalorder %s11, 0
    %p141 = por %p139, %p140
    %p142 = scmp.ne.s32.totalorder %s131, %s134
    %p143 = scmp.eq.s32.totalorder %s16, 3
    %p144 = por %p142, %p143
    %p145 = scmp.ne.s32.totalorder %s134, %s135
    %p146 = scmp.eq.s32.totalorder %s16, 0
    %p147 = por %p145, %p146
    %p148 = scmp.ne.s32.totalorder %s134, %s135
    %p149 = scmp.eq.s32.totalorder %s17, 3
    %p150 = por %p148, %p149
    %p152 = scmp.ne.s32.totalorder %s135, %s151
    %p153 = scmp.eq.s32.totalorder %s17, 0
    %p154 = por %p152, %p153
    %p155 = scmp.le.s32.totalorder 1, %s11
    %p156 = scmp.lt.s32.totalorder %s11, 5
    %p157 = pnand %p155, %p156
    %p158 = pneg %p157
    // Predicated region
    $region9: #{down_forward.1} parent=5 // pred_check
      _
    $region10: #{down_forward.1} parent=5 // pred_check_branch
      %160 = sbr.rel (%p157) target = $region12
    $region11: #{down_forward.1} parent=5 // pred_region
      %s161 = ssub.s32 %s11, 1
      // Predicated region
      $region13: #{down_forward.1} parent=11 // pred_check
        %p162 = pneg %p58
      $region14: #{down_forward.1} parent=11 // pred_check_branch
        %164 = sbr.rel (%p162) target = $region16
      $region15: #{down_forward.1} parent=11 // pred_region
        _
      $region16: #{down_forward.1} parent=11 // pred_fallthru
        _
      // Predicated region
      $region17: #{down_forward.1} parent=11 // pred_check
        %p165 = pneg %p79
      $region18: #{down_forward.1} parent=11 // pred_check_branch
        %167 = sbr.rel (%p165) target = $region20
      $region19: #{down_forward.1} parent=11 // pred_region
        _
      $region20: #{down_forward.1} parent=11 // pred_fallthru
        _
      // Predicated region
      $region21: #{down_forward.1} parent=11 // pred_check
        %p168 = pneg %p100
      $region22: #{down_forward.1} parent=11 // pred_check_branch
        %170 = sbr.rel (%p168) target = $region24
      $region23: #{down_forward.1} parent=11 // pred_region
        _
      $region24: #{down_forward.1} parent=11 // pred_fallthru
        _
      // Predicated region
      $region25: #{down_forward.1} parent=11 // pred_check
        %p171 = pneg %p121
      $region26: #{down_forward.1} parent=11 // pred_check_branch
        %173 = sbr.rel (%p171) target = $region28
      $region27: #{down_forward.1} parent=11 // pred_region
        _
      $region28: #{down_forward.1} parent=11 // pred_fallthru
        _
    $region12: #{down_forward.1} parent=5 // pred_fallthru
      _
    %p174 = scmp.lt.s32.totalorder %s11, 4
    // Predicated region
    $region29: #{down_forward.1} parent=5 // pred_check
      %p175 = pneg %p174
    $region30: #{down_forward.1} parent=5 // pred_check_branch
      %177 = sbr.rel (%p175) target = $region32
    $region31: #{down_forward.1} parent=5 // pred_region
      // Predicated region
      $region33: #{down_forward.1} parent=31 // pred_check
        %p178 = pneg %p31
      $region34: #{down_forward.1} parent=31 // pred_check_branch
        %180 = sbr.rel (%p178) target = $region36
      $region35: #{down_forward.1} parent=31 // pred_region
        %p181 = scmp.lt.s32.totalorder %s11, 3
        %s182 = scalar_select %p181, %s11, 3
        %s183 = smul.addr %s182, 32
        %s184 = smul.addr %s183, 8
        %s185 = scalar_lea.vmem %s0, %s184
      $region36: #{down_forward.1} parent=31 // pred_fallthru
        _
    $region32: #{down_forward.1} parent=5 // pred_fallthru
      _
    %p186 = scmp.le.s32.totalorder 1, %s11
    %p187 = scmp.lt.s32.totalorder %s11, 5
    %p188 = pnand %p186, %p187
    %p189 = pneg %p188
    // Predicated region
    $region37: #{down_forward.1} parent=5 // pred_check
      _
    $region38: #{down_forward.1} parent=5 // pred_check_branch
      %191 = sbr.rel (%p188) target = $region40
    $region39: #{down_forward.1} parent=5 // pred_region
      %s192 = ssub.s32 %s11, 1
      %p193 = scmp.lt.s32.totalorder %s16, 3
      %s194 = scalar_select %p193, %s16, 3
      %s195 = smul.addr %s194, 32
      %s196 = smul.addr %s195, 8
      %s197 = scalar_lea.vmem %s0, %s196
      %p198 = pneg %p37
      %p199 = pneg %p34
      %p200 = pneg %p58
      %p201 = pneg %p55
      %p202 = pneg %p79
      %p203 = pneg %p76
      %p204 = pneg %p100
      %p205 = pneg %p97
      %p206 = pneg %p121
      %p207 = pneg %p118
      %p208 = pneg %p147
      %p209 = pneg %p144
      %p210 = scmp.lt.s32.totalorder %s16, 3
      %s211 = scalar_select %p210, %s16, 3
      %s212 = smul.addr %s211, 4
      %s213 = smul.addr %s212, 8
      %s214 = scalar_lea.vmem %s5, %s213
      %p215 = scmp.lt.s32.totalorder %s16, 3
      %s216 = scalar_select %p215, %s16, 3
      %s217 = smul.addr %s216, 32
      %s218 = smul.addr %s217, 8
      %s219 = scalar_lea.vmem %s0, %s218
      %p220 = scmp.lt.s32.totalorder %s16, 3
      %s221 = scalar_select %p220, %s16, 3
      %s222 = smul.addr %s221, 4
      %s223 = smul.addr %s222, 8
      %s224 = scalar_lea.vmem %s5, %s223
      %p226 = scmp.lt.s32.totalorder %s16, 0
      %s227 = ssub.s32 0, %s16
      %s228 = scalar_select %p226, %s227, %s16
      %s229 = sand.u32 %s228, 1
      %s230 = ssub.s32 0, %s229
      %s231 = scalar_select %p226, %s230, %s229
      %p232 = scmp.ne.s32.totalorder %s231, 0
      %p233 = scmp.lt.s32.totalorder %s231, 0
      %p234 = pnand %p233, %p232
      %p235 = pneg %p234
      %s236 = sadd.s32 %s231, 2
      %s237 = scalar_select %p235, %s236, %s231
      %s238 = smul.u32 %s237, 4
      %v239 = vld [vmem:[%s219] sm:$0xff]
      %v240 = vld [vmem:[%s219 + $0x8] sm:$0xff]
      %v241 = vld [vmem:[%s219 + $0x20] sm:$0xff]
      %v242 = vld [vmem:[%s219 + $0x28] sm:$0xff]
      %v243 = vld [vmem:[%s219 + $0x40] sm:$0xff]
      %v244 = vld [vmem:[%s219 + $0x48] sm:$0xff]
      %v245 = vld [vmem:[%s219 + $0x60] sm:$0xff]
      %v246 = vld [vmem:[%s219 + $0x68] sm:$0xff]
      %v247 = vld [vmem:[%s219 + $0x80] sm:$0xff]
      %v248 = vld [vmem:[%s219 + $0x88] sm:$0xff]
      %v249 = vld [vmem:[%s219 + $0xa0] sm:$0xff]
      %v250 = vld [vmem:[%s219 + $0xa8] sm:$0xff]
      %v251 = vld [vmem:[%s219 + $0xc0] sm:$0xff]
      %v252 = vld [vmem:[%s219 + $0xc8] sm:$0xff]
      %v253 = vld [vmem:[%s219 + $0xe0] sm:$0xff]
      %v254 = vld [vmem:[%s219 + $0xe8] sm:$0xff]
      %s255 = scalar_lea.vmem %s219, 16
      %v256 = vld [vmem:[%s255] sm:$0xff]
      %v257 = vld [vmem:[%s255 + $0x8] sm:$0xff]
      %v258 = vld [vmem:[%s255 + $0x20] sm:$0xff]
      %v259 = vld [vmem:[%s255 + $0x28] sm:$0xff]
      %v260 = vld [vmem:[%s255 + $0x40] sm:$0xff]
      %v261 = vld [vmem:[%s255 + $0x48] sm:$0xff]
      %v262 = vld [vmem:[%s255 + $0x60] sm:$0xff]
      %v263 = vld [vmem:[%s255 + $0x68] sm:$0xff]
      %v264 = vld [vmem:[%s255 + $0x80] sm:$0xff]
      %v265 = vld [vmem:[%s255 + $0x88] sm:$0xff]
      %v266 = vld [vmem:[%s255 + $0xa0] sm:$0xff]
      %v267 = vld [vmem:[%s255 + $0xa8] sm:$0xff]
      %v268 = vld [vmem:[%s255 + $0xc0] sm:$0xff]
      %v269 = vld [vmem:[%s255 + $0xc8] sm:$0xff]
      %v270 = vld [vmem:[%s255 + $0xe0] sm:$0xff]
      %v271 = vld [vmem:[%s255 + $0xe8] sm:$0xff]
      %v272 = vmax.f32 %v239, %v256
      %v273 = vmax.f32 %v240, %v257
      %v274 = vmax.f32 %v241, %v258
      %v275 = vmax.f32 %v242, %v259
      %v276 = vmax.f32 %v243, %v260
      %v277 = vmax.f32 %v244, %v261
      %v278 = vmax.f32 %v245, %v262
      %v279 = vmax.f32 %v246, %v263
      %v280 = vmax.f32 %v247, %v264
      %v281 = vmax.f32 %v248, %v265
      %v282 = vmax.f32 %v249, %v266
      %v283 = vmax.f32 %v250, %v267
      %v284 = vmax.f32 %v251, %v268
      %v285 = vmax.f32 %v252, %v269
      %v286 = vmax.f32 %v253, %v270
      %v287 = vmax.f32 %v254, %v271
      %v288 = vmax.f32 %v272, %v273
      %v289 = vmax.f32 %v274, %v275
      %v290 = vmax.f32 %v276, %v277
      %v291 = vmax.f32 %v278, %v279
      %v292 = vmax.f32 %v280, %v281
      %v293 = vmax.f32 %v282, %v283
      %v294 = vmax.f32 %v284, %v285
      %v295 = vmax.f32 %v286, %v287
      %v302 = vrot.slane %v288, 7
      %v303 = vrot.slane %v289, 7
      %v304 = vrot.slane %v290, 7
      %v305 = vrot.slane %v291, 7
      %v306 = vrot.slane %v292, 7
      %v307 = vrot.slane %v293, 7
      %vm314 = vcmask 1040384
      %v315 = vsel %vm314, 0.0, %v302
      %v316 = vsel %vm314, 0.0, %v303
      %v317 = vsel %vm314, 0.0, %v304
      %v318 = vsel %vm314, 0.0, %v305
      %v319 = vsel %vm314, 0.0, %v306
      %v320 = vsel %vm314, 0.0, %v307
      %v321 = vrot.slane %v288, 1
      %v322 = vrot.slane %v289, 1
      %v323 = vrot.slane %v290, 1
      %v324 = vrot.slane %v291, 1
      %v325 = vrot.slane %v292, 1
      %v326 = vrot.slane %v293, 1
      %vm333 = vcmask 1046528
      %v334 = vsel %vm333, %v321, 0.0
      %v335 = vsel %vm333, %v322, 0.0
      %v336 = vsel %vm333, %v323, 0.0
      %v337 = vsel %vm333, %v324, 0.0
      %v338 = vsel %vm333, %v325, 0.0
      %v339 = vsel %vm333, %v326, 0.0
      %v341 = vrot.slane %v294, 7
      %v343 = vsel %vm314, 0.0, %v341
      %v344 = vrot.slane %v294, 1
      %v346 = vsel %vm333, %v344, 0.0
      %v348 = vrot.slane %v295, 7
      %v350 = vsel %vm314, 0.0, %v348
      %v351 = vrot.slane %v295, 1
      %v353 = vsel %vm333, %v351, 0.0
      %v354 = vpack.c.bf16 %v316, %v315
      %v355 = vpack.c.bf16 %v289, %v288
      %v356 = vpack.c.bf16 %v335, %v334
      %v357 = vpack.c.bf16 %v317, %v316
      %v358 = vpack.c.bf16 %v290, %v289
      %v359 = vpack.c.bf16 %v336, %v335
      %v360 = vpack.c.bf16 %v318, %v317
      %v361 = vpack.c.bf16 %v291, %v290
      %v362 = vpack.c.bf16 %v337, %v336
      %v363 = vpack.c.bf16 %v319, %v318
      %v364 = vpack.c.bf16 %v292, %v291
      %v365 = vpack.c.bf16 %v338, %v337
      %v366 = vpack.c.bf16 %v320, %v319
      %v367 = vpack.c.bf16 %v293, %v292
      %v368 = vpack.c.bf16 %v339, %v338
      %v369 = vpack.c.bf16 %v343, %v320
      %v370 = vpack.c.bf16 %v294, %v293
      %v371 = vpack.c.bf16 %v346, %v339
      %v372 = vpack.c.bf16 %v350, %v343
      %v373 = vpack.c.bf16 %v295, %v294
      %v374 = vpack.c.bf16 %v353, %v346
      %v375 = vld [vmem:[%s1] sm:$0xf]
      %v376 = vld [vmem:[%s1 + $0x4] sm:$0xf]
      %v377 = vld [vmem:[%s1 + $0x8] sm:$0xf]
      %v378 = vld [vmem:[%s1 + $0xc] sm:$0xf]
      %v379 = vld [vmem:[%s1 + $0x10] sm:$0xf]
      %v380 = vld [vmem:[%s1 + $0x14] sm:$0xf]
      %v381 = vld [vmem:[%s1 + $0x18] sm:$0xf]
      %v382 = vld [vmem:[%s1 + $0x1c] sm:$0xf]
      %v383 = vld [vmem:[%s1 + $0x20] sm:$0xf]
      %v384 = vld [vmem:[%s1 + $0x24] sm:$0xf]
      %v385 = vld [vmem:[%s1 + $0x28] sm:$0xf]
      %v386 = vld [vmem:[%s1 + $0x2c] sm:$0xf]
      %v387 = vld [vmem:[%s1 + $0x30] sm:$0xf]
      %v388 = vld [vmem:[%s1 + $0x34] sm:$0xf]
      %v389 = vld [vmem:[%s1 + $0x38] sm:$0xf]
      %v390 = vld [vmem:[%s1 + $0x3c] sm:$0xf]
      %v391 = vld [vmem:[%s1 + $0x40] sm:$0xf]
      %v392 = vld [vmem:[%s1 + $0x44] sm:$0xf]
      %v393 = vld [vmem:[%s1 + $0x48] sm:$0xf]
      %v394 = vld [vmem:[%s1 + $0x4c] sm:$0xf]
      %v395 = vld [vmem:[%s1 + $0x50] sm:$0xf]
      %v396 = vld [vmem:[%s1 + $0x54] sm:$0xf]
      %v397 = vld [vmem:[%s1 + $0x58] sm:$0xf]
      %v398 = vld [vmem:[%s1 + $0x5c] sm:$0xf]
      %v399 = vld [vmem:[%s1 + $0x60] sm:$0xf]
      %v400 = vld [vmem:[%s1 + $0x64] sm:$0xf]
      %v401 = vld [vmem:[%s1 + $0x68] sm:$0xf]
      %v402 = vld [vmem:[%s1 + $0x6c] sm:$0xf]
      %v403 = vld [vmem:[%s1 + $0x70] sm:$0xf]
      %v404 = vld [vmem:[%s1 + $0x74] sm:$0xf]
      %v405 = vld [vmem:[%s1 + $0x78] sm:$0xf]
      %v406 = vld [vmem:[%s1 + $0x7c] sm:$0xf]
      %v407 = vld [vmem:[%s1 + $0x80] sm:$0xf]
      %v408 = vld [vmem:[%s1 + $0x84] sm:$0xf]
      %v409 = vld [vmem:[%s1 + $0x88] sm:$0xf]
      %v410 = vld [vmem:[%s1 + $0x8c] sm:$0xf]
      %v411 = vld [vmem:[%s1 + $0x90] sm:$0xf]
      %v412 = vld [vmem:[%s1 + $0x94] sm:$0xf]
      %v413 = vld [vmem:[%s1 + $0x98] sm:$0xf]
      %v414 = vld [vmem:[%s1 + $0x9c] sm:$0xf]
      %v415 = vld [vmem:[%s1 + $0xa0] sm:$0xf]
      %v416 = vld [vmem:[%s1 + $0xa4] sm:$0xf]
      %v417 = vld [vmem:[%s1 + $0xa8] sm:$0xf]
      %v418 = vld [vmem:[%s1 + $0xac] sm:$0xf]
      %v419 = vld [vmem:[%s1 + $0xb0] sm:$0xf]
      %v420 = vld [vmem:[%s1 + $0xb4] sm:$0xf]
      %v421 = vld [vmem:[%s1 + $0xb8] sm:$0xf]
      %v422 = vld [vmem:[%s1 + $0xbc] sm:$0xf]
      %v423 = vld [vmem:[%s1 + $0xc0] sm:$0xf]
      %v424 = vld [vmem:[%s1 + $0xc4] sm:$0xf]
      %v425 = vld [vmem:[%s1 + $0xc8] sm:$0xf]
      %v426 = vld [vmem:[%s1 + $0xcc] sm:$0xf]
      %v427 = vld [vmem:[%s1 + $0xd0] sm:$0xf]
      %v428 = vld [vmem:[%s1 + $0xd4] sm:$0xf]
      %v429 = vld [vmem:[%s1 + $0xd8] sm:$0xf]
      %v430 = vld [vmem:[%s1 + $0xdc] sm:$0xf]
      %v431 = vld [vmem:[%s1 + $0xe0] sm:$0xf]
      %v432 = vld [vmem:[%s1 + $0xe4] sm:$0xf]
      %v433 = vld [vmem:[%s1 + $0xe8] sm:$0xf]
      %v434 = vld [vmem:[%s1 + $0xec] sm:$0xf]
      %v435 = vld [vmem:[%s1 + $0xf0] sm:$0xf]
      %v436 = vld [vmem:[%s1 + $0xf4] sm:$0xf]
      %v437 = vld [vmem:[%s1 + $0xf8] sm:$0xf]
      %v438 = vld [vmem:[%s1 + $0xfc] sm:$0xf]
      %v439 = vld [vmem:[%s1 + $0x100] sm:$0xf]
      %v440 = vld [vmem:[%s1 + $0x104] sm:$0xf]
      %v441 = vld [vmem:[%s1 + $0x108] sm:$0xf]
      %v442 = vld [vmem:[%s1 + $0x10c] sm:$0xf]
      %v443 = vld [vmem:[%s1 + $0x110] sm:$0xf]
      %v444 = vld [vmem:[%s1 + $0x114] sm:$0xf]
      %v445 = vld [vmem:[%s1 + $0x118] sm:$0xf]
      %v446 = vld [vmem:[%s1 + $0x11c] sm:$0xf]
      %v447 = vld [vmem:[%s1 + $0x120] sm:$0xf]
      %v448 = vld [vmem:[%s1 + $0x124] sm:$0xf]
      %v449 = vld [vmem:[%s1 + $0x128] sm:$0xf]
      %v450 = vld [vmem:[%s1 + $0x12c] sm:$0xf]
      %v451 = vld [vmem:[%s1 + $0x130] sm:$0xf]
      %v452 = vld [vmem:[%s1 + $0x134] sm:$0xf]
      %v453 = vld [vmem:[%s1 + $0x138] sm:$0xf]
      %v454 = vld [vmem:[%s1 + $0x13c] sm:$0xf]
      %v455 = vld [vmem:[%s1 + $0x140] sm:$0xf]
      %v456 = vld [vmem:[%s1 + $0x144] sm:$0xf]
      %v457 = vld [vmem:[%s1 + $0x148] sm:$0xf]
      %v458 = vld [vmem:[%s1 + $0x14c] sm:$0xf]
      %v459 = vld [vmem:[%s1 + $0x150] sm:$0xf]
      %v460 = vld [vmem:[%s1 + $0x154] sm:$0xf]
      %v461 = vld [vmem:[%s1 + $0x158] sm:$0xf]
      %v462 = vld [vmem:[%s1 + $0x15c] sm:$0xf]
      %v463 = vld [vmem:[%s1 + $0x160] sm:$0xf]
      %v464 = vld [vmem:[%s1 + $0x164] sm:$0xf]
      %v465 = vld [vmem:[%s1 + $0x168] sm:$0xf]
      %v466 = vld [vmem:[%s1 + $0x16c] sm:$0xf]
      %v467 = vld [vmem:[%s1 + $0x170] sm:$0xf]
      %v468 = vld [vmem:[%s1 + $0x174] sm:$0xf]
      %v469 = vld [vmem:[%s1 + $0x178] sm:$0xf]
      %v470 = vld [vmem:[%s1 + $0x17c] sm:$0xf]
      %v471 = vld [vmem:[%s1 + $0x180] sm:$0xf]
      %v472 = vld [vmem:[%s1 + $0x184] sm:$0xf]
      %v473 = vld [vmem:[%s1 + $0x188] sm:$0xf]
      %v474 = vld [vmem:[%s1 + $0x18c] sm:$0xf]
      %v475 = vld [vmem:[%s1 + $0x190] sm:$0xf]
      %v476 = vld [vmem:[%s1 + $0x194] sm:$0xf]
      %v477 = vld [vmem:[%s1 + $0x198] sm:$0xf]
      %v478 = vld [vmem:[%s1 + $0x19c] sm:$0xf]
      %v479 = vld [vmem:[%s1 + $0x1a0] sm:$0xf]
      %v480 = vld [vmem:[%s1 + $0x1a4] sm:$0xf]
      %v481 = vld [vmem:[%s1 + $0x1a8] sm:$0xf]
      %v482 = vld [vmem:[%s1 + $0x1ac] sm:$0xf]
      %v483 = vld [vmem:[%s1 + $0x1b0] sm:$0xf]
      %v484 = vld [vmem:[%s1 + $0x1b4] sm:$0xf]
      %v485 = vld [vmem:[%s1 + $0x1b8] sm:$0xf]
      %v486 = vld [vmem:[%s1 + $0x1bc] sm:$0xf]
      %v487 = vld [vmem:[%s1 + $0x1c0] sm:$0xf]
      %v488 = vld [vmem:[%s1 + $0x1c4] sm:$0xf]
      %v489 = vld [vmem:[%s1 + $0x1c8] sm:$0xf]
      %v490 = vld [vmem:[%s1 + $0x1cc] sm:$0xf]
      %v491 = vld [vmem:[%s1 + $0x1d0] sm:$0xf]
      %v492 = vld [vmem:[%s1 + $0x1d4] sm:$0xf]
      %v493 = vld [vmem:[%s1 + $0x1d8] sm:$0xf]
      %v494 = vld [vmem:[%s1 + $0x1dc] sm:$0xf]
      %v495 = vld [vmem:[%s1 + $0x1e0] sm:$0xf]
      %v496 = vld [vmem:[%s1 + $0x1e4] sm:$0xf]
      %v497 = vld [vmem:[%s1 + $0x1e8] sm:$0xf]
      %v498 = vld [vmem:[%s1 + $0x1ec] sm:$0xf]
      %v499 = vld [vmem:[%s1 + $0x1f0] sm:$0xf]
      %v500 = vld [vmem:[%s1 + $0x1f4] sm:$0xf]
      %v501 = vld [vmem:[%s1 + $0x1f8] sm:$0xf]
      %v502 = vld [vmem:[%s1 + $0x1fc] sm:$0xf]
      %v503 = vld [vmem:[%s1 + $0x200] sm:$0xf]
      %v504 = vld [vmem:[%s1 + $0x204] sm:$0xf]
      %v505 = vld [vmem:[%s1 + $0x208] sm:$0xf]
      %v506 = vld [vmem:[%s1 + $0x20c] sm:$0xf]
      %v507 = vld [vmem:[%s1 + $0x210] sm:$0xf]
      %v508 = vld [vmem:[%s1 + $0x214] sm:$0xf]
      %v509 = vld [vmem:[%s1 + $0x218] sm:$0xf]
      %v510 = vld [vmem:[%s1 + $0x21c] sm:$0xf]
      %v511 = vld [vmem:[%s1 + $0x220] sm:$0xf]
      %v512 = vld [vmem:[%s1 + $0x224] sm:$0xf]
      %v513 = vld [vmem:[%s1 + $0x228] sm:$0xf]
      %v514 = vld [vmem:[%s1 + $0x22c] sm:$0xf]
      %v515 = vld [vmem:[%s1 + $0x230] sm:$0xf]
      %v516 = vld [vmem:[%s1 + $0x234] sm:$0xf]
      %v517 = vld [vmem:[%s1 + $0x238] sm:$0xf]
      %v518 = vld [vmem:[%s1 + $0x23c] sm:$0xf]
      %v519 = vld [vmem:[%s2] sm:$0x1]
      %v521 = vlaneseq
      %v522 = vshrl.u32 %v521, 7
      %v523 = vsub.s32 0, %v522
      %v524 = vrot.slane %v519, %v523
      %v670 = vunpack.c.l.b16 %v375
      %v671 = vunpack.c.l.b16 %v376
      %v672 = vunpack.c.l.b16 %v377
      %v673 = vunpack.c.l.b16 %v378
      %v674 = vunpack.c.l.b16 %v379
      %v675 = vunpack.c.l.b16 %v380
      %v676 = vunpack.c.l.b16 %v381
      %v677 = vunpack.c.l.b16 %v382
      %v678 = vunpack.c.l.b16 %v383
      %v679 = vunpack.c.l.b16 %v384
      %v680 = vunpack.c.l.b16 %v385
      %v681 = vunpack.c.l.b16 %v386
      %v682 = vunpack.c.l.b16 %v387
      %v683 = vunpack.c.l.b16 %v388
      %v684 = vunpack.c.l.b16 %v389
      %v685 = vunpack.c.l.b16 %v390
      %v686 = vunpack.c.l.b16 %v391
      %v687 = vunpack.c.l.b16 %v392
      %v688 = vunpack.c.l.b16 %v393
      %v689 = vunpack.c.l.b16 %v394
      %v690 = vunpack.c.l.b16 %v395
      %v691 = vunpack.c.l.b16 %v396
      %v692 = vunpack.c.l.b16 %v397
      %v693 = vunpack.c.l.b16 %v398
      %v694 = vunpack.c.l.b16 %v399
      %v695 = vunpack.c.l.b16 %v400
      %v696 = vunpack.c.l.b16 %v401
      %v697 = vunpack.c.l.b16 %v402
      %v698 = vunpack.c.l.b16 %v403
      %v699 = vunpack.c.l.b16 %v404
      %v700 = vunpack.c.l.b16 %v405
      %v701 = vunpack.c.l.b16 %v406
      %v702 = vunpack.c.l.b16 %v407
      %v703 = vunpack.c.l.b16 %v408
      %v704 = vunpack.c.l.b16 %v409
      %v705 = vunpack.c.l.b16 %v410
      %v706 = vunpack.c.l.b16 %v411
      %v707 = vunpack.c.l.b16 %v412
      %v708 = vunpack.c.l.b16 %v413
      %v709 = vunpack.c.l.b16 %v414
      %v710 = vunpack.c.l.b16 %v415
      %v711 = vunpack.c.l.b16 %v416
      %v712 = vunpack.c.l.b16 %v417
      %v713 = vunpack.c.l.b16 %v418
      %v714 = vunpack.c.l.b16 %v419
      %v715 = vunpack.c.l.b16 %v420
      %v716 = vunpack.c.l.b16 %v421
      %v717 = vunpack.c.l.b16 %v422
      %v718 = vunpack.c.l.b16 %v423
      %v719 = vunpack.c.l.b16 %v424
      %v720 = vunpack.c.l.b16 %v425
      %v721 = vunpack.c.l.b16 %v426
      %v722 = vunpack.c.l.b16 %v427
      %v723 = vunpack.c.l.b16 %v428
      %v724 = vunpack.c.l.b16 %v429
      %v725 = vunpack.c.l.b16 %v430
      %v726 = vunpack.c.l.b16 %v431
      %v727 = vunpack.c.l.b16 %v432
      %v728 = vunpack.c.l.b16 %v433
      %v729 = vunpack.c.l.b16 %v434
      %v730 = vunpack.c.l.b16 %v435
      %v731 = vunpack.c.l.b16 %v436
      %v732 = vunpack.c.l.b16 %v437
      %v733 = vunpack.c.l.b16 %v438
      %v734 = vunpack.c.l.b16 %v439
      %v735 = vunpack.c.l.b16 %v440
      %v736 = vunpack.c.l.b16 %v441
      %v737 = vunpack.c.l.b16 %v442
      %v738 = vunpack.c.l.b16 %v443
      %v739 = vunpack.c.l.b16 %v444
      %v740 = vunpack.c.l.b16 %v445
      %v741 = vunpack.c.l.b16 %v446
      %v742 = vunpack.c.l.b16 %v447
      %v743 = vunpack.c.l.b16 %v448
      %v744 = vunpack.c.l.b16 %v449
      %v745 = vunpack.c.l.b16 %v450
      %v746 = vunpack.c.l.b16 %v451
      %v747 = vunpack.c.l.b16 %v452
      %v748 = vunpack.c.l.b16 %v453
      %v749 = vunpack.c.l.b16 %v454
      %v750 = vunpack.c.l.b16 %v455
      %v751 = vunpack.c.l.b16 %v456
      %v752 = vunpack.c.l.b16 %v457
      %v753 = vunpack.c.l.b16 %v458
      %v754 = vunpack.c.l.b16 %v459
      %v755 = vunpack.c.l.b16 %v460
      %v756 = vunpack.c.l.b16 %v461
      %v757 = vunpack.c.l.b16 %v462
      %v758 = vunpack.c.l.b16 %v463
      %v759 = vunpack.c.l.b16 %v464
      %v760 = vunpack.c.l.b16 %v465
      %v761 = vunpack.c.l.b16 %v466
      %v762 = vunpack.c.l.b16 %v467
      %v763 = vunpack.c.l.b16 %v468
      %v764 = vunpack.c.l.b16 %v469
      %v765 = vunpack.c.l.b16 %v470
      %v766 = vunpack.c.l.b16 %v471
      %v767 = vunpack.c.l.b16 %v472
      %v768 = vunpack.c.l.b16 %v473
      %v769 = vunpack.c.l.b16 %v474
      %v770 = vunpack.c.l.b16 %v475
      %v771 = vunpack.c.l.b16 %v476
      %v772 = vunpack.c.l.b16 %v477
      %v773 = vunpack.c.l.b16 %v478
      %v774 = vunpack.c.l.b16 %v479
      %v775 = vunpack.c.l.b16 %v480
      %v776 = vunpack.c.l.b16 %v481
      %v777 = vunpack.c.l.b16 %v482
      %v778 = vunpack.c.l.b16 %v483
      %v779 = vunpack.c.l.b16 %v484
      %v780 = vunpack.c.l.b16 %v485
      %v781 = vunpack.c.l.b16 %v486
      %v782 = vunpack.c.l.b16 %v487
      %v783 = vunpack.c.l.b16 %v488
      %v784 = vunpack.c.l.b16 %v489
      %v785 = vunpack.c.l.b16 %v490
      %v786 = vunpack.c.l.b16 %v491
      %v787 = vunpack.c.l.b16 %v492
      %v788 = vunpack.c.l.b16 %v493
      %v789 = vunpack.c.l.b16 %v494
      %v790 = vunpack.c.l.b16 %v495
      %v791 = vunpack.c.l.b16 %v496
      %v792 = vunpack.c.l.b16 %v497
      %v793 = vunpack.c.l.b16 %v498
      %v794 = vunpack.c.l.b16 %v499
      %v795 = vunpack.c.l.b16 %v500
      %v796 = vunpack.c.l.b16 %v501
      %v797 = vunpack.c.l.b16 %v502
      %v798 = vunpack.c.l.b16 %v503
      %v799 = vunpack.c.l.b16 %v504
      %v800 = vunpack.c.l.b16 %v505
      %v801 = vunpack.c.l.b16 %v506
      %v802 = vunpack.c.l.b16 %v507
      %v803 = vunpack.c.l.b16 %v508
      %v804 = vunpack.c.l.b16 %v509
      %v805 = vunpack.c.l.b16 %v510
      %v806 = vunpack.c.l.b16 %v511
      %v807 = vunpack.c.l.b16 %v512
      %v808 = vunpack.c.l.b16 %v513
      %v809 = vunpack.c.l.b16 %v514
      %v810 = vunpack.c.l.b16 %v515
      %v811 = vunpack.c.l.b16 %v516
      %v812 = vunpack.c.l.b16 %v517
      %v813 = vunpack.c.l.b16 %v518
      %v814 = vpack.c.b16 %v671, %v670
      %v815 = vpack.c.b16 %v673, %v672
      %v816 = vpack.c.b16 %v675, %v674
      %v817 = vpack.c.b16 %v677, %v676
      %v818 = vpack.c.b16 %v679, %v678
      %v819 = vpack.c.b16 %v681, %v680
      %v820 = vpack.c.b16 %v683, %v682
      %v821 = vpack.c.b16 %v685, %v684
      %v822 = vpack.c.b16 %v687, %v686
      %v823 = vpack.c.b16 %v689, %v688
      %v824 = vpack.c.b16 %v691, %v690
      %v825 = vpack.c.b16 %v693, %v692
      %v826 = vpack.c.b16 %v695, %v694
      %v827 = vpack.c.b16 %v697, %v696
      %v828 = vpack.c.b16 %v699, %v698
      %v829 = vpack.c.b16 %v701, %v700
      %v830 = vpack.c.b16 %v703, %v702
      %v831 = vpack.c.b16 %v705, %v704
      %v832 = vpack.c.b16 %v707, %v706
      %v833 = vpack.c.b16 %v709, %v708
      %v834 = vpack.c.b16 %v711, %v710
      %v835 = vpack.c.b16 %v713, %v712
      %v836 = vpack.c.b16 %v715, %v714
      %v837 = vpack.c.b16 %v717, %v716
      %v838 = vpack.c.b16 %v719, %v718
      %v839 = vpack.c.b16 %v721, %v720
      %v840 = vpack.c.b16 %v723, %v722
      %v841 = vpack.c.b16 %v725, %v724
      %v842 = vpack.c.b16 %v727, %v726
      %v843 = vpack.c.b16 %v729, %v728
      %v844 = vpack.c.b16 %v731, %v730
      %v845 = vpack.c.b16 %v733, %v732
      %v846 = vpack.c.b16 %v735, %v734
      %v847 = vpack.c.b16 %v737, %v736
      %v848 = vpack.c.b16 %v739, %v738
      %v849 = vpack.c.b16 %v741, %v740
      %v850 = vpack.c.b16 %v743, %v742
      %v851 = vpack.c.b16 %v745, %v744
      %v852 = vpack.c.b16 %v747, %v746
      %v853 = vpack.c.b16 %v749, %v748
      %v854 = vpack.c.b16 %v751, %v750
      %v855 = vpack.c.b16 %v753, %v752
      %v856 = vpack.c.b16 %v755, %v754
      %v857 = vpack.c.b16 %v757, %v756
      %v858 = vpack.c.b16 %v759, %v758
      %v859 = vpack.c.b16 %v761, %v760
      %v860 = vpack.c.b16 %v763, %v762
      %v861 = vpack.c.b16 %v765, %v764
      %v862 = vpack.c.b16 %v767, %v766
      %v863 = vpack.c.b16 %v769, %v768
      %v864 = vpack.c.b16 %v771, %v770
      %v865 = vpack.c.b16 %v773, %v772
      %v866 = vpack.c.b16 %v775, %v774
      %v867 = vpack.c.b16 %v777, %v776
      %v868 = vpack.c.b16 %v779, %v778
      %v869 = vpack.c.b16 %v781, %v780
      %v870 = vpack.c.b16 %v783, %v782
      %v871 = vpack.c.b16 %v785, %v784
      %v872 = vpack.c.b16 %v787, %v786
      %v873 = vpack.c.b16 %v789, %v788
      %v874 = vpack.c.b16 %v791, %v790
      %v875 = vpack.c.b16 %v793, %v792
      %v876 = vpack.c.b16 %v795, %v794
      %v877 = vpack.c.b16 %v797, %v796
      %v878 = vpack.c.b16 %v799, %v798
      %v879 = vpack.c.b16 %v801, %v800
      %v880 = vpack.c.b16 %v803, %v802
      %v881 = vpack.c.b16 %v805, %v804
      %v882 = vpack.c.b16 %v807, %v806
      %v883 = vpack.c.b16 %v809, %v808
      %v884 = vpack.c.b16 %v811, %v810
      %v885 = vpack.c.b16 %v813, %v812
      %958 = vmatprep.subr.bf16.mxu0 0
      %959 = vmatpush1.bf16.msra.mxu0 %v821
      %960 = vmatprep.subr.bf16.mxu0 0
      %961 = vmatpush1.bf16.msra.mxu0 %v820
      %962 = vmatprep.subr.bf16.mxu0 0
      %963 = vmatpush1.bf16.msra.mxu0 %v819
      %964 = vmatprep.subr.bf16.mxu0 0
      %965 = vmatpush1.bf16.msra.mxu0 %v818
      %966 = vmatprep.subr.bf16.mxu0 0
      %967 = vmatpush1.bf16.msra.mxu0 %v817
      %968 = vmatprep.subr.bf16.mxu0 0
      %969 = vmatpush1.bf16.msra.mxu0 %v816
      %970 = vmatprep.subr.bf16.mxu0 0
      %971 = vmatpush1.bf16.msra.mxu0 %v815
      %972 = vmatprep.subr.bf16.mxu0 0
      %973 = vmatpush1.bf16.msra.mxu0 %v814
      %974 = vmatprep.subr.bf16.mxu0 0
      %975 = vmatpush2.bf16.msra.mxu0 %v829
      %976 = vmatprep.subr.bf16.mxu0 0
      %977 = vmatpush2.bf16.msra.mxu0 %v828
      %978 = vmatprep.subr.bf16.mxu0 0
      %979 = vmatpush2.bf16.msra.mxu0 %v827
      %980 = vmatprep.subr.bf16.mxu0 0
      %981 = vmatpush2.bf16.msra.mxu0 %v826
      %982 = vmatprep.subr.bf16.mxu0 0
      %983 = vmatpush2.bf16.msra.mxu0 %v825
      %984 = vmatprep.subr.bf16.mxu0 0
      %985 = vmatpush2.bf16.msra.mxu0 %v824
      %986 = vmatprep.subr.bf16.mxu0 0
      %987 = vmatpush2.bf16.msra.mxu0 %v823
      %988 = vmatprep.subr.bf16.mxu0 0
      %989 = vmatpush2.bf16.msra.mxu0 %v822
      %990 = vmatprep.mubr.bf16.mxu0 %v355
      %991 = vmatmul.mubr.bf16.gmra.mxu0 %v354
      %v992 = vpop.f32.mrf.mxu0
      %v993 = vadd.f32 %v524, %v992
      %v994 = vpop.f32.mrf.mxu0
      %v995 = vpop.f32.mrf.mxu0
      %v996 = vadd.f32 %v524, %v995
      %v997 = vpop.f32.mrf.mxu0
      %998 = vmatprep.mubr.bf16.mxu0 %v361
      %999 = vmatmul.mubr.bf16.gmra.mxu0 %v360
      %v1000 = vpop.f32.mrf.mxu0
      %v1001 = vadd.f32 %v524, %v1000
      %v1002 = vpop.f32.mrf.mxu0
      %v1003 = vpop.f32.mrf.mxu0
      %v1004 = vadd.f32 %v524, %v1003
      %v1005 = vpop.f32.mrf.mxu0
      %1006 = vmatprep.mubr.bf16.mxu0 %v367
      %1007 = vmatmul.mubr.bf16.gmra.mxu0 %v366
      %v1008 = vpop.f32.mrf.mxu0
      %v1009 = vadd.f32 %v524, %v1008
      %v1010 = vpop.f32.mrf.mxu0
      %v1011 = vpop.f32.mrf.mxu0
      %v1012 = vadd.f32 %v524, %v1011
      %v1013 = vpop.f32.mrf.mxu0
      %1014 = vdwg.mxu0
      %1015 = vmatprep.subr.bf16.mxu0 0
      %1016 = vmatpush1.bf16.msra.mxu0 %v837
      %1017 = vmatprep.subr.bf16.mxu0 0
      %1018 = vmatpush1.bf16.msra.mxu0 %v836
      %1019 = vmatprep.subr.bf16.mxu0 0
      %1020 = vmatpush1.bf16.msra.mxu0 %v835
      %1021 = vmatprep.subr.bf16.mxu0 0
      %1022 = vmatpush1.bf16.msra.mxu0 %v834
      %1023 = vmatprep.subr.bf16.mxu0 0
      %1024 = vmatpush1.bf16.msra.mxu0 %v833
      %1025 = vmatprep.subr.bf16.mxu0 0
      %1026 = vmatpush1.bf16.msra.mxu0 %v832
      %1027 = vmatprep.subr.bf16.mxu0 0
      %1028 = vmatpush1.bf16.msra.mxu0 %v831
      %1029 = vmatprep.subr.bf16.mxu0 0
      %1030 = vmatpush1.bf16.msra.mxu0 %v830
      %1031 = vmatprep.subr.bf16.mxu0 0
      %1032 = vmatpush2.bf16.msra.mxu0 %v845
      %1033 = vmatprep.subr.bf16.mxu0 0
      %1034 = vmatpush2.bf16.msra.mxu0 %v844
      %1035 = vmatprep.subr.bf16.mxu0 0
      %1036 = vmatpush2.bf16.msra.mxu0 %v843
      %1037 = vmatprep.subr.bf16.mxu0 0
      %1038 = vmatpush2.bf16.msra.mxu0 %v842
      %1039 = vmatprep.subr.bf16.mxu0 0
      %1040 = vmatpush2.bf16.msra.mxu0 %v841
      %1041 = vmatprep.subr.bf16.mxu0 0
      %1042 = vmatpush2.bf16.msra.mxu0 %v840
      %1043 = vmatprep.subr.bf16.mxu0 0
      %1044 = vmatpush2.bf16.msra.mxu0 %v839
      %1045 = vmatprep.subr.bf16.mxu0 0
      %1046 = vmatpush2.bf16.msra.mxu0 %v838
      %1047 = vmatprep.mubr.bf16.mxu0 %v357
      %1048 = vmatmul.mubr.bf16.gmra.mxu0 %v356
      %v1049 = vpop.f32.mrf.mxu0
      %v1050 = vadd.f32 %v993, %v1049
      %v1051 = vpop.f32.mrf.mxu0
      %v1052 = vpop.f32.mrf.mxu0
      %v1053 = vadd.f32 %v996, %v1052
      %v1054 = vpop.f32.mrf.mxu0
      %1055 = vmatprep.mubr.bf16.mxu0 %v363
      %1056 = vmatmul.mubr.bf16.gmra.mxu0 %v362
      %v1057 = vpop.f32.mrf.mxu0
      %v1058 = vadd.f32 %v1001, %v1057
      %v1059 = vpop.f32.mrf.mxu0
      %v1060 = vpop.f32.mrf.mxu0
      %v1061 = vadd.f32 %v1004, %v1060
      %v1062 = vpop.f32.mrf.mxu0
      %1063 = vmatprep.mubr.bf16.mxu0 %v369
      %1064 = vmatmul.mubr.bf16.gmra.mxu0 %v368
      %v1065 = vpop.f32.mrf.mxu0
      %v1066 = vadd.f32 %v1009, %v1065
      %v1067 = vpop.f32.mrf.mxu0
      %v1068 = vpop.f32.mrf.mxu0
      %v1069 = vadd.f32 %v1012, %v1068
      %v1070 = vpop.f32.mrf.mxu0
      %1071 = vdwg.mxu0
      %1072 = vmatprep.subr.bf16.mxu0 0
      %1073 = vmatpush1.bf16.msra.mxu0 %v853
      %1074 = vmatprep.subr.bf16.mxu0 0
      %1075 = vmatpush1.bf16.msra.mxu0 %v852
      %1076 = vmatprep.subr.bf16.mxu0 0
      %1077 = vmatpush1.bf16.msra.mxu0 %v851
      %1078 = vmatprep.subr.bf16.mxu0 0
      %1079 = vmatpush1.bf16.msra.mxu0 %v850
      %1080 = vmatprep.subr.bf16.mxu0 0
      %1081 = vmatpush1.bf16.msra.mxu0 %v849
      %1082 = vmatprep.subr.bf16.mxu0 0
      %1083 = vmatpush1.bf16.msra.mxu0 %v848
      %1084 = vmatprep.subr.bf16.mxu0 0
      %1085 = vmatpush1.bf16.msra.mxu0 %v847
      %1086 = vmatprep.subr.bf16.mxu0 0
      %1087 = vmatpush1.bf16.msra.mxu0 %v846
      %1088 = vmatprep.subr.bf16.mxu0 0
      %1089 = vmatpush2.bf16.msra.mxu0 %v861
      %1090 = vmatprep.subr.bf16.mxu0 0
      %1091 = vmatpush2.bf16.msra.mxu0 %v860
      %1092 = vmatprep.subr.bf16.mxu0 0
      %1093 = vmatpush2.bf16.msra.mxu0 %v859
      %1094 = vmatprep.subr.bf16.mxu0 0
      %1095 = vmatpush2.bf16.msra.mxu0 %v858
      %1096 = vmatprep.subr.bf16.mxu0 0
      %1097 = vmatpush2.bf16.msra.mxu0 %v857
      %1098 = vmatprep.subr.bf16.mxu0 0
      %1099 = vmatpush2.bf16.msra.mxu0 %v856
      %1100 = vmatprep.subr.bf16.mxu0 0
      %1101 = vmatpush2.bf16.msra.mxu0 %v855
      %1102 = vmatprep.subr.bf16.mxu0 0
      %1103 = vmatpush2.bf16.msra.mxu0 %v854
      %1104 = vmatprep.mubr.bf16.mxu0 %v359
      %1105 = vmatmul.mubr.bf16.gmra.mxu0 %v358
      %v1106 = vpop.f32.mrf.mxu0
      %v1107 = vadd.f32 %v1050, %v1106
      %v1108 = vpop.f32.mrf.mxu0
      %v1109 = vpop.f32.mrf.mxu0
      %v1110 = vadd.f32 %v1053, %v1109
      %v1111 = vpop.f32.mrf.mxu0
      %1112 = vmatprep.mubr.bf16.mxu0 %v365
      %1113 = vmatmul.mubr.bf16.gmra.mxu0 %v364
      %v1114 = vpop.f32.mrf.mxu0
      %v1115 = vadd.f32 %v1058, %v1114
      %v1116 = vpop.f32.mrf.mxu0
      %v1117 = vpop.f32.mrf.mxu0
      %v1118 = vadd.f32 %v1061, %v1117
      %v1119 = vpop.f32.mrf.mxu0
      %1120 = vmatprep.mubr.bf16.mxu0 %v371
      %1121 = vmatmul.mubr.bf16.gmra.mxu0 %v370
      %v1122 = vpop.f32.mrf.mxu0
      %v1123 = vadd.f32 %v1066, %v1122
      %v1124 = vpop.f32.mrf.mxu0
      %v1125 = vpop.f32.mrf.mxu0
      %v1126 = vadd.f32 %v1069, %v1125
      %v1127 = vpop.f32.mrf.mxu0
      %1128 = vdwg.mxu0
      %1129 = vmatprep.subr.bf16.mxu0 0
      %1130 = vmatpush1.bf16.msra.mxu0 %v869
      %1131 = vmatprep.subr.bf16.mxu0 0
      %1132 = vmatpush1.bf16.msra.mxu0 %v868
      %1133 = vmatprep.subr.bf16.mxu0 0
      %1134 = vmatpush1.bf16.msra.mxu0 %v867
      %1135 = vmatprep.subr.bf16.mxu0 0
      %1136 = vmatpush1.bf16.msra.mxu0 %v866
      %1137 = vmatprep.subr.bf16.mxu0 0
      %1138 = vmatpush1.bf16.msra.mxu0 %v865
      %1139 = vmatprep.subr.bf16.mxu0 0
      %1140 = vmatpush1.bf16.msra.mxu0 %v864
      %1141 = vmatprep.subr.bf16.mxu0 0
      %1142 = vmatpush1.bf16.msra.mxu0 %v863
      %1143 = vmatprep.subr.bf16.mxu0 0
      %1144 = vmatpush1.bf16.msra.mxu0 %v862
      %1145 = vmatprep.subr.bf16.mxu0 0
      %1146 = vmatpush2.bf16.msra.mxu0 %v877
      %1147 = vmatprep.subr.bf16.mxu0 0
      %1148 = vmatpush2.bf16.msra.mxu0 %v876
      %1149 = vmatprep.subr.bf16.mxu0 0
      %1150 = vmatpush2.bf16.msra.mxu0 %v875
      %1151 = vmatprep.subr.bf16.mxu0 0
      %1152 = vmatpush2.bf16.msra.mxu0 %v874
      %1153 = vmatprep.subr.bf16.mxu0 0
      %1154 = vmatpush2.bf16.msra.mxu0 %v873
      %1155 = vmatprep.subr.bf16.mxu0 0
      %1156 = vmatpush2.bf16.msra.mxu0 %v872
      %1157 = vmatprep.subr.bf16.mxu0 0
      %1158 = vmatpush2.bf16.msra.mxu0 %v871
      %1159 = vmatprep.subr.bf16.mxu0 0
      %1160 = vmatpush2.bf16.msra.mxu0 %v870
      %1161 = vmatprep.mubr.bf16.mxu0 %v361
      %1162 = vmatmul.mubr.bf16.gmra.mxu0 %v360
      %v1163 = vpop.f32.mrf.mxu0
      %v1164 = vadd.f32 %v1107, %v1163
      %v1165 = vpop.f32.mrf.mxu0
      %v1166 = vpop.f32.mrf.mxu0
      %v1167 = vadd.f32 %v1110, %v1166
      %v1168 = vpop.f32.mrf.mxu0
      %1169 = vmatprep.mubr.bf16.mxu0 %v367
      %1170 = vmatmul.mubr.bf16.gmra.mxu0 %v366
      %v1171 = vpop.f32.mrf.mxu0
      %v1172 = vadd.f32 %v1115, %v1171
      %v1173 = vpop.f32.mrf.mxu0
      %v1174 = vpop.f32.mrf.mxu0
      %v1175 = vadd.f32 %v1118, %v1174
      %v1176 = vpop.f32.mrf.mxu0
      %1177 = vmatprep.mubr.bf16.mxu0 %v373
      %1178 = vmatmul.mubr.bf16.gmra.mxu0 %v372
      %v1179 = vpop.f32.mrf.mxu0
      %v1180 = vadd.f32 %v1123, %v1179
      %v1181 = vpop.f32.mrf.mxu0
      %v1182 = vpop.f32.mrf.mxu0
      %v1183 = vadd.f32 %v1126, %v1182
      %v1184 = vpop.f32.mrf.mxu0
      %1185 = vdwg.mxu0
      %1186 = vmatprep.subr.bf16.mxu0 0
      %1187 = vmatpush1.bf16.msra.mxu0 %v885
      %1188 = vmatprep.subr.bf16.mxu0 0
      %1189 = vmatpush1.bf16.msra.mxu0 %v884
      %1190 = vmatprep.subr.bf16.mxu0 0
      %1191 = vmatpush1.bf16.msra.mxu0 %v883
      %1192 = vmatprep.subr.bf16.mxu0 0
      %1193 = vmatpush1.bf16.msra.mxu0 %v882
      %1194 = vmatprep.subr.bf16.mxu0 0
      %1195 = vmatpush1.bf16.msra.mxu0 %v881
      %1196 = vmatprep.subr.bf16.mxu0 0
      %1197 = vmatpush1.bf16.msra.mxu0 %v880
      %1198 = vmatprep.subr.bf16.mxu0 0
      %1199 = vmatpush1.bf16.msra.mxu0 %v879
      %1200 = vmatprep.subr.bf16.mxu0 0
      %1201 = vmatpush1.bf16.msra.mxu0 %v878
      %1202 = vmatprep.subr.bf16.mxu0 0
      %1203 = vmatpush2.bf16.msra.mxu0 0
      %1204 = vmatprep.subr.bf16.mxu0 0
      %1205 = vmatpush2.bf16.msra.mxu0 0
      %1206 = vmatprep.subr.bf16.mxu0 0
      %1207 = vmatpush2.bf16.msra.mxu0 0
      %1208 = vmatprep.subr.bf16.mxu0 0
      %1209 = vmatpush2.bf16.msra.mxu0 0
      %1210 = vmatprep.subr.bf16.mxu0 0
      %1211 = vmatpush2.bf16.msra.mxu0 0
      %1212 = vmatprep.subr.bf16.mxu0 0
      %1213 = vmatpush2.bf16.msra.mxu0 0
      %1214 = vmatprep.subr.bf16.mxu0 0
      %1215 = vmatpush2.bf16.msra.mxu0 0
      %1216 = vmatprep.subr.bf16.mxu0 0
      %1217 = vmatpush2.bf16.msra.mxu0 0
      %1218 = vmatprep.mubr.bf16.mxu0 0
      %1219 = vmatmul.mubr.bf16.gmra.mxu0 %v362
      %v1220 = vpop.f32.mrf.mxu0
      %v1221 = vadd.f32 %v1164, %v1220
      %v1222 = vpop.f32.mrf.mxu0
      %v1223 = vpop.f32.mrf.mxu0
      %v1224 = vadd.f32 %v1167, %v1223
      %v1225 = vpop.f32.mrf.mxu0
      %1226 = vmatprep.mubr.bf16.mxu0 0
      %1227 = vmatmul.mubr.bf16.gmra.mxu0 %v368
      %v1228 = vpop.f32.mrf.mxu0
      %v1229 = vadd.f32 %v1172, %v1228
      %v1230 = vpop.f32.mrf.mxu0
      %v1231 = vpop.f32.mrf.mxu0
      %v1232 = vadd.f32 %v1175, %v1231
      %v1233 = vpop.f32.mrf.mxu0
      %1234 = vmatprep.mubr.bf16.mxu0 0
      %1235 = vmatmul.mubr.bf16.gmra.mxu0 %v374
      %v1236 = vpop.f32.mrf.mxu0
      %v1237 = vadd.f32 %v1180, %v1236
      %v1238 = vpop.f32.mrf.mxu0
      %v1239 = vpop.f32.mrf.mxu0
      %v1240 = vadd.f32 %v1183, %v1239
      %v1241 = vpop.f32.mrf.mxu0
      %1242 = vdwg.mxu0
      %v1243 = vmax.f32 %v1221, 0.0
      %v1244 = vmax.f32 %v1224, 0.0
      %v1245 = vmax.f32 %v1229, 0.0
      %v1246 = vmax.f32 %v1232, 0.0
      %v1247 = vmax.f32 %v1237, 0.0
      %v1248 = vmax.f32 %v1240, 0.0
      %s1249 = ssub.s32 %s238, 1
      %v1250 = vstv %s1249
      %v1251 = vadd.s32 %v1250, 1
      %v1252 = vadd.s32 %v1250, 2
      %v1253 = vadd.s32 %v1250, 3
      %v1254 = vadd.s32 %v1250, 4
      %v1255 = vadd.s32 %v1250, 5
      %vm1256 = vcmp.ge.s32.totalorder %v1250, 0
      %vm1257 = vcmp.ge.s32.totalorder %v1251, 0
      %vm1258 = vcmp.ge.s32.totalorder %v1252, 0
      %vm1259 = vcmp.ge.s32.totalorder %v1253, 0
      %vm1260 = vcmp.ge.s32.totalorder %v1254, 0
      %vm1261 = vcmp.ge.s32.totalorder %v1255, 0
      %vm1262 = vcmp.lt.s32.totalorder %v1250, 8
      %vm1263 = vcmp.lt.s32.totalorder %v1251, 8
      %vm1264 = vcmp.lt.s32.totalorder %v1252, 8
      %vm1265 = vcmp.lt.s32.totalorder %v1253, 8
      %vm1266 = vcmp.lt.s32.totalorder %v1254, 8
      %vm1267 = vcmp.lt.s32.totalorder %v1255, 8
      %vm1268 = vmand %vm1256, %vm1262
      %vm1269 = vmand %vm1257, %vm1263
      %vm1270 = vmand %vm1258, %vm1264
      %vm1271 = vmand %vm1259, %vm1265
      %vm1272 = vmand %vm1260, %vm1266
      %vm1273 = vmand %vm1261, %vm1267
      %v1274 = vsel %vm1268, 1, 0
      %v1275 = vsel %vm1269, 1, 0
      %v1276 = vsel %vm1270, 1, 0
      %v1277 = vsel %vm1271, 1, 0
      %v1278 = vsel %vm1272, 1, 0
      %v1279 = vsel %vm1273, 1, 0
      %vm1280 = vcmp.eq.s32.totalorder %v1274, 1
      %vm1281 = vcmp.eq.s32.totalorder %v1275, 1
      %vm1282 = vcmp.eq.s32.totalorder %v1276, 1
      %vm1283 = vcmp.eq.s32.totalorder %v1277, 1
      %vm1284 = vcmp.eq.s32.totalorder %v1278, 1
      %vm1285 = vcmp.eq.s32.totalorder %v1279, 1
      %v1286 = vsel %vm1280, %v1243, 0.0
      %v1287 = vsel %vm1281, %v1244, 0.0
      %v1288 = vsel %vm1282, %v1245, 0.0
      %v1289 = vsel %vm1283, %v1246, 0.0
      %v1290 = vsel %vm1284, %v1247, 0.0
      %v1291 = vsel %vm1285, %v1248, 0.0
      %v1296 = vrot.slane %v1286, 7
      %v1297 = vrot.slane %v1287, 7
      %v1298 = vrot.slane %v1288, 7
      %v1299 = vrot.slane %v1289, 7
      %v1304 = vsel %vm314, 0.0, %v1296
      %v1305 = vsel %vm314, 0.0, %v1297
      %v1306 = vsel %vm314, 0.0, %v1298
      %v1307 = vsel %vm314, 0.0, %v1299
      %v1308 = vrot.slane %v1286, 1
      %v1309 = vrot.slane %v1287, 1
      %v1310 = vrot.slane %v1288, 1
      %v1311 = vrot.slane %v1289, 1
      %v1316 = vsel %vm333, %v1308, 0.0
      %v1317 = vsel %vm333, %v1309, 0.0
      %v1318 = vsel %vm333, %v1310, 0.0
      %v1319 = vsel %vm333, %v1311, 0.0
      %v1321 = vrot.slane %v1290, 7
      %v1323 = vsel %vm314, 0.0, %v1321
      %v1324 = vrot.slane %v1290, 1
      %v1326 = vsel %vm333, %v1324, 0.0
      %v1328 = vrot.slane %v1291, 7
      %v1330 = vsel %vm314, 0.0, %v1328
      %v1331 = vrot.slane %v1291, 1
      %v1333 = vsel %vm333, %v1331, 0.0
      %v1334 = vpack.c.bf16 %v1305, %v1304
      %v1335 = vpack.c.bf16 %v1287, %v1286
      %v1336 = vpack.c.bf16 %v1317, %v1316
      %v1337 = vpack.c.bf16 %v1306, %v1305
      %v1338 = vpack.c.bf16 %v1288, %v1287
      %v1339 = vpack.c.bf16 %v1318, %v1317
      %v1340 = vpack.c.bf16 %v1307, %v1306
      %v1341 = vpack.c.bf16 %v1289, %v1288
      %v1342 = vpack.c.bf16 %v1319, %v1318
      %v1343 = vpack.c.bf16 %v1323, %v1307
      %v1344 = vpack.c.bf16 %v1290, %v1289
      %v1345 = vpack.c.bf16 %v1326, %v1319
      %v1346 = vpack.c.bf16 %v1330, %v1323
      %v1347 = vpack.c.bf16 %v1291, %v1290
      %v1348 = vpack.c.bf16 %v1333, %v1326
      %v1349 = vld [vmem:[%s3] sm:$0xf]
      %v1350 = vld [vmem:[%s3 + $0x4] sm:$0xf]
      %v1351 = vld [vmem:[%s3 + $0x8] sm:$0xf]
      %v1352 = vld [vmem:[%s3 + $0xc] sm:$0xf]
      %v1353 = vld [vmem:[%s3 + $0x10] sm:$0xf]
      %v1354 = vld [vmem:[%s3 + $0x14] sm:$0xf]
      %v1355 = vld [vmem:[%s3 + $0x18] sm:$0xf]
      %v1356 = vld [vmem:[%s3 + $0x1c] sm:$0xf]
      %v1357 = vld [vmem:[%s3 + $0x20] sm:$0xf]
      %v1358 = vld [vmem:[%s3 + $0x24] sm:$0xf]
      %v1359 = vld [vmem:[%s3 + $0x28] sm:$0xf]
      %v1360 = vld [vmem:[%s3 + $0x2c] sm:$0xf]
      %v1361 = vld [vmem:[%s3 + $0x30] sm:$0xf]
      %v1362 = vld [vmem:[%s3 + $0x34] sm:$0xf]
      %v1363 = vld [vmem:[%s3 + $0x38] sm:$0xf]
      %v1364 = vld [vmem:[%s3 + $0x3c] sm:$0xf]
      %v1365 = vld [vmem:[%s3 + $0x40] sm:$0xf]
      %v1366 = vld [vmem:[%s3 + $0x44] sm:$0xf]
      %v1367 = vld [vmem:[%s3 + $0x48] sm:$0xf]
      %v1368 = vld [vmem:[%s3 + $0x4c] sm:$0xf]
      %v1369 = vld [vmem:[%s3 + $0x50] sm:$0xf]
      %v1370 = vld [vmem:[%s3 + $0x54] sm:$0xf]
      %v1371 = vld [vmem:[%s3 + $0x58] sm:$0xf]
      %v1372 = vld [vmem:[%s3 + $0x5c] sm:$0xf]
      %v1373 = vld [vmem:[%s3 + $0x60] sm:$0xf]
      %v1374 = vld [vmem:[%s3 + $0x64] sm:$0xf]
      %v1375 = vld [vmem:[%s3 + $0x68] sm:$0xf]
      %v1376 = vld [vmem:[%s3 + $0x6c] sm:$0xf]
      %v1377 = vld [vmem:[%s3 + $0x70] sm:$0xf]
      %v1378 = vld [vmem:[%s3 + $0x74] sm:$0xf]
      %v1379 = vld [vmem:[%s3 + $0x78] sm:$0xf]
      %v1380 = vld [vmem:[%s3 + $0x7c] sm:$0xf]
      %v1381 = vld [vmem:[%s3 + $0x80] sm:$0xf]
      %v1382 = vld [vmem:[%s3 + $0x84] sm:$0xf]
      %v1383 = vld [vmem:[%s3 + $0x88] sm:$0xf]
      %v1384 = vld [vmem:[%s3 + $0x8c] sm:$0xf]
      %v1385 = vld [vmem:[%s3 + $0x90] sm:$0xf]
      %v1386 = vld [vmem:[%s3 + $0x94] sm:$0xf]
      %v1387 = vld [vmem:[%s3 + $0x98] sm:$0xf]
      %v1388 = vld [vmem:[%s3 + $0x9c] sm:$0xf]
      %v1389 = vld [vmem:[%s3 + $0xa0] sm:$0xf]
      %v1390 = vld [vmem:[%s3 + $0xa4] sm:$0xf]
      %v1391 = vld [vmem:[%s3 + $0xa8] sm:$0xf]
      %v1392 = vld [vmem:[%s3 + $0xac] sm:$0xf]
      %v1393 = vld [vmem:[%s3 + $0xb0] sm:$0xf]
      %v1394 = vld [vmem:[%s3 + $0xb4] sm:$0xf]
      %v1395 = vld [vmem:[%s3 + $0xb8] sm:$0xf]
      %v1396 = vld [vmem:[%s3 + $0xbc] sm:$0xf]
      %v1397 = vld [vmem:[%s3 + $0xc0] sm:$0xf]
      %v1398 = vld [vmem:[%s3 + $0xc4] sm:$0xf]
      %v1399 = vld [vmem:[%s3 + $0xc8] sm:$0xf]
      %v1400 = vld [vmem:[%s3 + $0xcc] sm:$0xf]
      %v1401 = vld [vmem:[%s3 + $0xd0] sm:$0xf]
      %v1402 = vld [vmem:[%s3 + $0xd4] sm:$0xf]
      %v1403 = vld [vmem:[%s3 + $0xd8] sm:$0xf]
      %v1404 = vld [vmem:[%s3 + $0xdc] sm:$0xf]
      %v1405 = vld [vmem:[%s3 + $0xe0] sm:$0xf]
      %v1406 = vld [vmem:[%s3 + $0xe4] sm:$0xf]
      %v1407 = vld [vmem:[%s3 + $0xe8] sm:$0xf]
      %v1408 = vld [vmem:[%s3 + $0xec] sm:$0xf]
      %v1409 = vld [vmem:[%s3 + $0xf0] sm:$0xf]
      %v1410 = vld [vmem:[%s3 + $0xf4] sm:$0xf]
      %v1411 = vld [vmem:[%s3 + $0xf8] sm:$0xf]
      %v1412 = vld [vmem:[%s3 + $0xfc] sm:$0xf]
      %v1413 = vld [vmem:[%s3 + $0x100] sm:$0xf]
      %v1414 = vld [vmem:[%s3 + $0x104] sm:$0xf]
      %v1415 = vld [vmem:[%s3 + $0x108] sm:$0xf]
      %v1416 = vld [vmem:[%s3 + $0x10c] sm:$0xf]
      %v1417 = vld [vmem:[%s3 + $0x110] sm:$0xf]
      %v1418 = vld [vmem:[%s3 + $0x114] sm:$0xf]
      %v1419 = vld [vmem:[%s3 + $0x118] sm:$0xf]
      %v1420 = vld [vmem:[%s3 + $0x11c] sm:$0xf]
      %v1421 = vld [vmem:[%s3 + $0x120] sm:$0xf]
      %v1422 = vld [vmem:[%s3 + $0x124] sm:$0xf]
      %v1423 = vld [vmem:[%s3 + $0x128] sm:$0xf]
      %v1424 = vld [vmem:[%s3 + $0x12c] sm:$0xf]
      %v1425 = vld [vmem:[%s3 + $0x130] sm:$0xf]
      %v1426 = vld [vmem:[%s3 + $0x134] sm:$0xf]
      %v1427 = vld [vmem:[%s3 + $0x138] sm:$0xf]
      %v1428 = vld [vmem:[%s3 + $0x13c] sm:$0xf]
      %v1429 = vld [vmem:[%s3 + $0x140] sm:$0xf]
      %v1430 = vld [vmem:[%s3 + $0x144] sm:$0xf]
      %v1431 = vld [vmem:[%s3 + $0x148] sm:$0xf]
      %v1432 = vld [vmem:[%s3 + $0x14c] sm:$0xf]
      %v1433 = vld [vmem:[%s3 + $0x150] sm:$0xf]
      %v1434 = vld [vmem:[%s3 + $0x154] sm:$0xf]
      %v1435 = vld [vmem:[%s3 + $0x158] sm:$0xf]
      %v1436 = vld [vmem:[%s3 + $0x15c] sm:$0xf]
      %v1437 = vld [vmem:[%s3 + $0x160] sm:$0xf]
      %v1438 = vld [vmem:[%s3 + $0x164] sm:$0xf]
      %v1439 = vld [vmem:[%s3 + $0x168] sm:$0xf]
      %v1440 = vld [vmem:[%s3 + $0x16c] sm:$0xf]
      %v1441 = vld [vmem:[%s3 + $0x170] sm:$0xf]
      %v1442 = vld [vmem:[%s3 + $0x174] sm:$0xf]
      %v1443 = vld [vmem:[%s3 + $0x178] sm:$0xf]
      %v1444 = vld [vmem:[%s3 + $0x17c] sm:$0xf]
      %v1445 = vld [vmem:[%s3 + $0x180] sm:$0xf]
      %v1446 = vld [vmem:[%s3 + $0x184] sm:$0xf]
      %v1447 = vld [vmem:[%s3 + $0x188] sm:$0xf]
      %v1448 = vld [vmem:[%s3 + $0x18c] sm:$0xf]
      %v1449 = vld [vmem:[%s3 + $0x190] sm:$0xf]
      %v1450 = vld [vmem:[%s3 + $0x194] sm:$0xf]
      %v1451 = vld [vmem:[%s3 + $0x198] sm:$0xf]
      %v1452 = vld [vmem:[%s3 + $0x19c] sm:$0xf]
      %v1453 = vld [vmem:[%s3 + $0x1a0] sm:$0xf]
      %v1454 = vld [vmem:[%s3 + $0x1a4] sm:$0xf]
      %v1455 = vld [vmem:[%s3 + $0x1a8] sm:$0xf]
      %v1456 = vld [vmem:[%s3 + $0x1ac] sm:$0xf]
      %v1457 = vld [vmem:[%s3 + $0x1b0] sm:$0xf]
      %v1458 = vld [vmem:[%s3 + $0x1b4] sm:$0xf]
      %v1459 = vld [vmem:[%s3 + $0x1b8] sm:$0xf]
      %v1460 = vld [vmem:[%s3 + $0x1bc] sm:$0xf]
      %v1461 = vld [vmem:[%s3 + $0x1c0] sm:$0xf]
      %v1462 = vld [vmem:[%s3 + $0x1c4] sm:$0xf]
      %v1463 = vld [vmem:[%s3 + $0x1c8] sm:$0xf]
      %v1464 = vld [vmem:[%s3 + $0x1cc] sm:$0xf]
      %v1465 = vld [vmem:[%s3 + $0x1d0] sm:$0xf]
      %v1466 = vld [vmem:[%s3 + $0x1d4] sm:$0xf]
      %v1467 = vld [vmem:[%s3 + $0x1d8] sm:$0xf]
      %v1468 = vld [vmem:[%s3 + $0x1dc] sm:$0xf]
      %v1469 = vld [vmem:[%s3 + $0x1e0] sm:$0xf]
      %v1470 = vld [vmem:[%s3 + $0x1e4] sm:$0xf]
      %v1471 = vld [vmem:[%s3 + $0x1e8] sm:$0xf]
      %v1472 = vld [vmem:[%s3 + $0x1ec] sm:$0xf]
      %v1473 = vld [vmem:[%s3 + $0x1f0] sm:$0xf]
      %v1474 = vld [vmem:[%s3 + $0x1f4] sm:$0xf]
      %v1475 = vld [vmem:[%s3 + $0x1f8] sm:$0xf]
      %v1476 = vld [vmem:[%s3 + $0x1fc] sm:$0xf]
      %v1477 = vld [vmem:[%s3 + $0x200] sm:$0xf]
      %v1478 = vld [vmem:[%s3 + $0x204] sm:$0xf]
      %v1479 = vld [vmem:[%s3 + $0x208] sm:$0xf]
      %v1480 = vld [vmem:[%s3 + $0x20c] sm:$0xf]
      %v1481 = vld [vmem:[%s3 + $0x210] sm:$0xf]
      %v1482 = vld [vmem:[%s3 + $0x214] sm:$0xf]
      %v1483 = vld [vmem:[%s3 + $0x218] sm:$0xf]
      %v1484 = vld [vmem:[%s3 + $0x21c] sm:$0xf]
      %v1485 = vld [vmem:[%s3 + $0x220] sm:$0xf]
      %v1486 = vld [vmem:[%s3 + $0x224] sm:$0xf]
      %v1487 = vld [vmem:[%s3 + $0x228] sm:$0xf]
      %v1488 = vld [vmem:[%s3 + $0x22c] sm:$0xf]
      %v1489 = vld [vmem:[%s3 + $0x230] sm:$0xf]
      %v1490 = vld [vmem:[%s3 + $0x234] sm:$0xf]
      %v1491 = vld [vmem:[%s3 + $0x238] sm:$0xf]
      %v1492 = vld [vmem:[%s3 + $0x23c] sm:$0xf]
      %v1493 = vld [vmem:[%s4] sm:$0x1]
      %v1495 = vlaneseq
      %v1496 = vshrl.u32 %v1495, 7
      %v1497 = vsub.s32 0, %v1496
      %v1498 = vrot.slane %v1493, %v1497
      %v1644 = vunpack.c.l.b16 %v1349
      %v1645 = vunpack.c.l.b16 %v1350
      %v1646 = vunpack.c.l.b16 %v1351
      %v1647 = vunpack.c.l.b16 %v1352
      %v1648 = vunpack.c.l.b16 %v1353
      %v1649 = vunpack.c.l.b16 %v1354
      %v1650 = vunpack.c.l.b16 %v1355
      %v1651 = vunpack.c.l.b16 %v1356
      %v1652 = vunpack.c.l.b16 %v1357
      %v1653 = vunpack.c.l.b16 %v1358
      %v1654 = vunpack.c.l.b16 %v1359
      %v1655 = vunpack.c.l.b16 %v1360
      %v1656 = vunpack.c.l.b16 %v1361
      %v1657 = vunpack.c.l.b16 %v1362
      %v1658 = vunpack.c.l.b16 %v1363
      %v1659 = vunpack.c.l.b16 %v1364
      %v1660 = vunpack.c.l.b16 %v1365
      %v1661 = vunpack.c.l.b16 %v1366
      %v1662 = vunpack.c.l.b16 %v1367
      %v1663 = vunpack.c.l.b16 %v1368
      %v1664 = vunpack.c.l.b16 %v1369
      %v1665 = vunpack.c.l.b16 %v1370
      %v1666 = vunpack.c.l.b16 %v1371
      %v1667 = vunpack.c.l.b16 %v1372
      %v1668 = vunpack.c.l.b16 %v1373
      %v1669 = vunpack.c.l.b16 %v1374
      %v1670 = vunpack.c.l.b16 %v1375
      %v1671 = vunpack.c.l.b16 %v1376
      %v1672 = vunpack.c.l.b16 %v1377
      %v1673 = vunpack.c.l.b16 %v1378
      %v1674 = vunpack.c.l.b16 %v1379
      %v1675 = vunpack.c.l.b16 %v1380
      %v1676 = vunpack.c.l.b16 %v1381
      %v1677 = vunpack.c.l.b16 %v1382
      %v1678 = vunpack.c.l.b16 %v1383
      %v1679 = vunpack.c.l.b16 %v1384
      %v1680 = vunpack.c.l.b16 %v1385
      %v1681 = vunpack.c.l.b16 %v1386
      %v1682 = vunpack.c.l.b16 %v1387
      %v1683 = vunpack.c.l.b16 %v1388
      %v1684 = vunpack.c.l.b16 %v1389
      %v1685 = vunpack.c.l.b16 %v1390
      %v1686 = vunpack.c.l.b16 %v1391
      %v1687 = vunpack.c.l.b16 %v1392
      %v1688 = vunpack.c.l.b16 %v1393
      %v1689 = vunpack.c.l.b16 %v1394
      %v1690 = vunpack.c.l.b16 %v1395
      %v1691 = vunpack.c.l.b16 %v1396
      %v1692 = vunpack.c.l.b16 %v1397
      %v1693 = vunpack.c.l.b16 %v1398
      %v1694 = vunpack.c.l.b16 %v1399
      %v1695 = vunpack.c.l.b16 %v1400
      %v1696 = vunpack.c.l.b16 %v1401
      %v1697 = vunpack.c.l.b16 %v1402
      %v1698 = vunpack.c.l.b16 %v1403
      %v1699 = vunpack.c.l.b16 %v1404
      %v1700 = vunpack.c.l.b16 %v1405
      %v1701 = vunpack.c.l.b16 %v1406
      %v1702 = vunpack.c.l.b16 %v1407
      %v1703 = vunpack.c.l.b16 %v1408
      %v1704 = vunpack.c.l.b16 %v1409
      %v1705 = vunpack.c.l.b16 %v1410
      %v1706 = vunpack.c.l.b16 %v1411
      %v1707 = vunpack.c.l.b16 %v1412
      %v1708 = vunpack.c.l.b16 %v1413
      %v1709 = vunpack.c.l.b16 %v1414
      %v1710 = vunpack.c.l.b16 %v1415
      %v1711 = vunpack.c.l.b16 %v1416
      %v1712 = vunpack.c.l.b16 %v1417
      %v1713 = vunpack.c.l.b16 %v1418
      %v1714 = vunpack.c.l.b16 %v1419
      %v1715 = vunpack.c.l.b16 %v1420
      %v1716 = vunpack.c.l.b16 %v1421
      %v1717 = vunpack.c.l.b16 %v1422
      %v1718 = vunpack.c.l.b16 %v1423
      %v1719 = vunpack.c.l.b16 %v1424
      %v1720 = vunpack.c.l.b16 %v1425
      %v1721 = vunpack.c.l.b16 %v1426
      %v1722 = vunpack.c.l.b16 %v1427
      %v1723 = vunpack.c.l.b16 %v1428
      %v1724 = vunpack.c.l.b16 %v1429
      %v1725 = vunpack.c.l.b16 %v1430
      %v1726 = vunpack.c.l.b16 %v1431
      %v1727 = vunpack.c.l.b16 %v1432
      %v1728 = vunpack.c.l.b16 %v1433
      %v1729 = vunpack.c.l.b16 %v1434
      %v1730 = vunpack.c.l.b16 %v1435
      %v1731 = vunpack.c.l.b16 %v1436
      %v1732 = vunpack.c.l.b16 %v1437
      %v1733 = vunpack.c.l.b16 %v1438
      %v1734 = vunpack.c.l.b16 %v1439
      %v1735 = vunpack.c.l.b16 %v1440
      %v1736 = vunpack.c.l.b16 %v1441
      %v1737 = vunpack.c.l.b16 %v1442
      %v1738 = vunpack.c.l.b16 %v1443
      %v1739 = vunpack.c.l.b16 %v1444
      %v1740 = vunpack.c.l.b16 %v1445
      %v1741 = vunpack.c.l.b16 %v1446
      %v1742 = vunpack.c.l.b16 %v1447
      %v1743 = vunpack.c.l.b16 %v1448
      %v1744 = vunpack.c.l.b16 %v1449
      %v1745 = vunpack.c.l.b16 %v1450
      %v1746 = vunpack.c.l.b16 %v1451
      %v1747 = vunpack.c.l.b16 %v1452
      %v1748 = vunpack.c.l.b16 %v1453
      %v1749 = vunpack.c.l.b16 %v1454
      %v1750 = vunpack.c.l.b16 %v1455
      %v1751 = vunpack.c.l.b16 %v1456
      %v1752 = vunpack.c.l.b16 %v1457
      %v1753 = vunpack.c.l.b16 %v1458
      %v1754 = vunpack.c.l.b16 %v1459
      %v1755 = vunpack.c.l.b16 %v1460
      %v1756 = vunpack.c.l.b16 %v1461
      %v1757 = vunpack.c.l.b16 %v1462
      %v1758 = vunpack.c.l.b16 %v1463
      %v1759 = vunpack.c.l.b16 %v1464
      %v1760 = vunpack.c.l.b16 %v1465
      %v1761 = vunpack.c.l.b16 %v1466
      %v1762 = vunpack.c.l.b16 %v1467
      %v1763 = vunpack.c.l.b16 %v1468
      %v1764 = vunpack.c.l.b16 %v1469
      %v1765 = vunpack.c.l.b16 %v1470
      %v1766 = vunpack.c.l.b16 %v1471
      %v1767 = vunpack.c.l.b16 %v1472
      %v1768 = vunpack.c.l.b16 %v1473
      %v1769 = vunpack.c.l.b16 %v1474
      %v1770 = vunpack.c.l.b16 %v1475
      %v1771 = vunpack.c.l.b16 %v1476
      %v1772 = vunpack.c.l.b16 %v1477
      %v1773 = vunpack.c.l.b16 %v1478
      %v1774 = vunpack.c.l.b16 %v1479
      %v1775 = vunpack.c.l.b16 %v1480
      %v1776 = vunpack.c.l.b16 %v1481
      %v1777 = vunpack.c.l.b16 %v1482
      %v1778 = vunpack.c.l.b16 %v1483
      %v1779 = vunpack.c.l.b16 %v1484
      %v1780 = vunpack.c.l.b16 %v1485
      %v1781 = vunpack.c.l.b16 %v1486
      %v1782 = vunpack.c.l.b16 %v1487
      %v1783 = vunpack.c.l.b16 %v1488
      %v1784 = vunpack.c.l.b16 %v1489
      %v1785 = vunpack.c.l.b16 %v1490
      %v1786 = vunpack.c.l.b16 %v1491
      %v1787 = vunpack.c.l.b16 %v1492
      %v1788 = vpack.c.b16 %v1645, %v1644
      %v1789 = vpack.c.b16 %v1647, %v1646
      %v1790 = vpack.c.b16 %v1649, %v1648
      %v1791 = vpack.c.b16 %v1651, %v1650
      %v1792 = vpack.c.b16 %v1653, %v1652
      %v1793 = vpack.c.b16 %v1655, %v1654
      %v1794 = vpack.c.b16 %v1657, %v1656
      %v1795 = vpack.c.b16 %v1659, %v1658
      %v1796 = vpack.c.b16 %v1661, %v1660
      %v1797 = vpack.c.b16 %v1663, %v1662
      %v1798 = vpack.c.b16 %v1665, %v1664
      %v1799 = vpack.c.b16 %v1667, %v1666
      %v1800 = vpack.c.b16 %v1669, %v1668
      %v1801 = vpack.c.b16 %v1671, %v1670
      %v1802 = vpack.c.b16 %v1673, %v1672
      %v1803 = vpack.c.b16 %v1675, %v1674
      %v1804 = vpack.c.b16 %v1677, %v1676
      %v1805 = vpack.c.b16 %v1679, %v1678
      %v1806 = vpack.c.b16 %v1681, %v1680
      %v1807 = vpack.c.b16 %v1683, %v1682
      %v1808 = vpack.c.b16 %v1685, %v1684
      %v1809 = vpack.c.b16 %v1687, %v1686
      %v1810 = vpack.c.b16 %v1689, %v1688
      %v1811 = vpack.c.b16 %v1691, %v1690
      %v1812 = vpack.c.b16 %v1693, %v1692
      %v1813 = vpack.c.b16 %v1695, %v1694
      %v1814 = vpack.c.b16 %v1697, %v1696
      %v1815 = vpack.c.b16 %v1699, %v1698
      %v1816 = vpack.c.b16 %v1701, %v1700
      %v1817 = vpack.c.b16 %v1703, %v1702
      %v1818 = vpack.c.b16 %v1705, %v1704
      %v1819 = vpack.c.b16 %v1707, %v1706
      %v1820 = vpack.c.b16 %v1709, %v1708
      %v1821 = vpack.c.b16 %v1711, %v1710
      %v1822 = vpack.c.b16 %v1713, %v1712
      %v1823 = vpack.c.b16 %v1715, %v1714
      %v1824 = vpack.c.b16 %v1717, %v1716
      %v1825 = vpack.c.b16 %v1719, %v1718
      %v1826 = vpack.c.b16 %v1721, %v1720
      %v1827 = vpack.c.b16 %v1723, %v1722
      %v1828 = vpack.c.b16 %v1725, %v1724
      %v1829 = vpack.c.b16 %v1727, %v1726
      %v1830 = vpack.c.b16 %v1729, %v1728
      %v1831 = vpack.c.b16 %v1731, %v1730
      %v1832 = vpack.c.b16 %v1733, %v1732
      %v1833 = vpack.c.b16 %v1735, %v1734
      %v1834 = vpack.c.b16 %v1737, %v1736
      %v1835 = vpack.c.b16 %v1739, %v1738
      %v1836 = vpack.c.b16 %v1741, %v1740
      %v1837 = vpack.c.b16 %v1743, %v1742
      %v1838 = vpack.c.b16 %v1745, %v1744
      %v1839 = vpack.c.b16 %v1747, %v1746
      %v1840 = vpack.c.b16 %v1749, %v1748
      %v1841 = vpack.c.b16 %v1751, %v1750
      %v1842 = vpack.c.b16 %v1753, %v1752
      %v1843 = vpack.c.b16 %v1755, %v1754
      %v1844 = vpack.c.b16 %v1757, %v1756
      %v1845 = vpack.c.b16 %v1759, %v1758
      %v1846 = vpack.c.b16 %v1761, %v1760
      %v1847 = vpack.c.b16 %v1763, %v1762
      %v1848 = vpack.c.b16 %v1765, %v1764
      %v1849 = vpack.c.b16 %v1767, %v1766
      %v1850 = vpack.c.b16 %v1769, %v1768
      %v1851 = vpack.c.b16 %v1771, %v1770
      %v1852 = vpack.c.b16 %v1773, %v1772
      %v1853 = vpack.c.b16 %v1775, %v1774
      %v1854 = vpack.c.b16 %v1777, %v1776
      %v1855 = vpack.c.b16 %v1779, %v1778
      %v1856 = vpack.c.b16 %v1781, %v1780
      %v1857 = vpack.c.b16 %v1783, %v1782
      %v1858 = vpack.c.b16 %v1785, %v1784
      %v1859 = vpack.c.b16 %v1787, %v1786
      %1932 = vmatprep.subr.bf16.mxu0 0
      %1933 = vmatpush1.bf16.msra.mxu0 %v1795
      %1934 = vmatprep.subr.bf16.mxu0 0
      %1935 = vmatpush1.bf16.msra.mxu0 %v1794
      %1936 = vmatprep.subr.bf16.mxu0 0
      %1937 = vmatpush1.bf16.msra.mxu0 %v1793
      %1938 = vmatprep.subr.bf16.mxu0 0
      %1939 = vmatpush1.bf16.msra.mxu0 %v1792
      %1940 = vmatprep.subr.bf16.mxu0 0
      %1941 = vmatpush1.bf16.msra.mxu0 %v1791
      %1942 = vmatprep.subr.bf16.mxu0 0
      %1943 = vmatpush1.bf16.msra.mxu0 %v1790
      %1944 = vmatprep.subr.bf16.mxu0 0
      %1945 = vmatpush1.bf16.msra.mxu0 %v1789
      %1946 = vmatprep.subr.bf16.mxu0 0
      %1947 = vmatpush1.bf16.msra.mxu0 %v1788
      %1948 = vmatprep.subr.bf16.mxu0 0
      %1949 = vmatpush2.bf16.msra.mxu0 %v1803
      %1950 = vmatprep.subr.bf16.mxu0 0
      %1951 = vmatpush2.bf16.msra.mxu0 %v1802
      %1952 = vmatprep.subr.bf16.mxu0 0
      %1953 = vmatpush2.bf16.msra.mxu0 %v1801
      %1954 = vmatprep.subr.bf16.mxu0 0
      %1955 = vmatpush2.bf16.msra.mxu0 %v1800
      %1956 = vmatprep.subr.bf16.mxu0 0
      %1957 = vmatpush2.bf16.msra.mxu0 %v1799
      %1958 = vmatprep.subr.bf16.mxu0 0
      %1959 = vmatpush2.bf16.msra.mxu0 %v1798
      %1960 = vmatprep.subr.bf16.mxu0 0
      %1961 = vmatpush2.bf16.msra.mxu0 %v1797
      %1962 = vmatprep.subr.bf16.mxu0 0
      %1963 = vmatpush2.bf16.msra.mxu0 %v1796
      %1964 = vmatprep.mubr.bf16.mxu0 %v1335
      %1965 = vmatmul.mubr.bf16.gmra.mxu0 %v1334
      %v1966 = vpop.f32.mrf.mxu0
      %v1967 = vadd.f32 %v1498, %v1966
      %v1968 = vpop.f32.mrf.mxu0
      %v1969 = vpop.f32.mrf.mxu0
      %v1970 = vadd.f32 %v1498, %v1969
      %v1971 = vpop.f32.mrf.mxu0
      %1972 = vmatprep.mubr.bf16.mxu0 %v1341
      %1973 = vmatmul.mubr.bf16.gmra.mxu0 %v1340
      %v1974 = vpop.f32.mrf.mxu0
      %v1975 = vadd.f32 %v1498, %v1974
      %v1976 = vpop.f32.mrf.mxu0
      %v1977 = vpop.f32.mrf.mxu0
      %v1978 = vadd.f32 %v1498, %v1977
      %v1979 = vpop.f32.mrf.mxu0
      %1980 = vdwg.mxu0
      %1981 = vmatprep.subr.bf16.mxu0 0
      %1982 = vmatpush1.bf16.msra.mxu0 %v1811
      %1983 = vmatprep.subr.bf16.mxu0 0
      %1984 = vmatpush1.bf16.msra.mxu0 %v1810
      %1985 = vmatprep.subr.bf16.mxu0 0
      %1986 = vmatpush1.bf16.msra.mxu0 %v1809
      %1987 = vmatprep.subr.bf16.mxu0 0
      %1988 = vmatpush1.bf16.msra.mxu0 %v1808
      %1989 = vmatprep.subr.bf16.mxu0 0
      %1990 = vmatpush1.bf16.msra.mxu0 %v1807
      %1991 = vmatprep.subr.bf16.mxu0 0
      %1992 = vmatpush1.bf16.msra.mxu0 %v1806
      %1993 = vmatprep.subr.bf16.mxu0 0
      %1994 = vmatpush1.bf16.msra.mxu0 %v1805
      %1995 = vmatprep.subr.bf16.mxu0 0
      %1996 = vmatpush1.bf16.msra.mxu0 %v1804
      %1997 = vmatprep.subr.bf16.mxu0 0
      %1998 = vmatpush2.bf16.msra.mxu0 %v1819
      %1999 = vmatprep.subr.bf16.mxu0 0
      %2000 = vmatpush2.bf16.msra.mxu0 %v1818
      %2001 = vmatprep.subr.bf16.mxu0 0
      %2002 = vmatpush2.bf16.msra.mxu0 %v1817
      %2003 = vmatprep.subr.bf16.mxu0 0
      %2004 = vmatpush2.bf16.msra.mxu0 %v1816
      %2005 = vmatprep.subr.bf16.mxu0 0
      %2006 = vmatpush2.bf16.msra.mxu0 %v1815
      %2007 = vmatprep.subr.bf16.mxu0 0
      %2008 = vmatpush2.bf16.msra.mxu0 %v1814
      %2009 = vmatprep.subr.bf16.mxu0 0
      %2010 = vmatpush2.bf16.msra.mxu0 %v1813
      %2011 = vmatprep.subr.bf16.mxu0 0
      %2012 = vmatpush2.bf16.msra.mxu0 %v1812
      %2013 = vmatprep.mubr.bf16.mxu0 %v1337
      %2014 = vmatmul.mubr.bf16.gmra.mxu0 %v1336
      %v2015 = vpop.f32.mrf.mxu0
      %v2016 = vadd.f32 %v1967, %v2015
      %v2017 = vpop.f32.mrf.mxu0
      %v2018 = vpop.f32.mrf.mxu0
      %v2019 = vadd.f32 %v1970, %v2018
      %v2020 = vpop.f32.mrf.mxu0
      %2021 = vmatprep.mubr.bf16.mxu0 %v1343
      %2022 = vmatmul.mubr.bf16.gmra.mxu0 %v1342
      %v2023 = vpop.f32.mrf.mxu0
      %v2024 = vadd.f32 %v1975, %v2023
      %v2025 = vpop.f32.mrf.mxu0
      %v2026 = vpop.f32.mrf.mxu0
      %v2027 = vadd.f32 %v1978, %v2026
      %v2028 = vpop.f32.mrf.mxu0
      %2029 = vdwg.mxu0
      %2030 = vmatprep.subr.bf16.mxu0 0
      %2031 = vmatpush1.bf16.msra.mxu0 %v1827
      %2032 = vmatprep.subr.bf16.mxu0 0
      %2033 = vmatpush1.bf16.msra.mxu0 %v1826
      %2034 = vmatprep.subr.bf16.mxu0 0
      %2035 = vmatpush1.bf16.msra.mxu0 %v1825
      %2036 = vmatprep.subr.bf16.mxu0 0
      %2037 = vmatpush1.bf16.msra.mxu0 %v1824
      %2038 = vmatprep.subr.bf16.mxu0 0
      %2039 = vmatpush1.bf16.msra.mxu0 %v1823
      %2040 = vmatprep.subr.bf16.mxu0 0
      %2041 = vmatpush1.bf16.msra.mxu0 %v1822
      %2042 = vmatprep.subr.bf16.mxu0 0
      %2043 = vmatpush1.bf16.msra.mxu0 %v1821
      %2044 = vmatprep.subr.bf16.mxu0 0
      %2045 = vmatpush1.bf16.msra.mxu0 %v1820
      %2046 = vmatprep.subr.bf16.mxu0 0
      %2047 = vmatpush2.bf16.msra.mxu0 %v1835
      %2048 = vmatprep.subr.bf16.mxu0 0
      %2049 = vmatpush2.bf16.msra.mxu0 %v1834
      %2050 = vmatprep.subr.bf16.mxu0 0
      %2051 = vmatpush2.bf16.msra.mxu0 %v1833
      %2052 = vmatprep.subr.bf16.mxu0 0
      %2053 = vmatpush2.bf16.msra.mxu0 %v1832
      %2054 = vmatprep.subr.bf16.mxu0 0
      %2055 = vmatpush2.bf16.msra.mxu0 %v1831
      %2056 = vmatprep.subr.bf16.mxu0 0
      %2057 = vmatpush2.bf16.msra.mxu0 %v1830
      %2058 = vmatprep.subr.bf16.mxu0 0
      %2059 = vmatpush2.bf16.msra.mxu0 %v1829
      %2060 = vmatprep.subr.bf16.mxu0 0
      %2061 = vmatpush2.bf16.msra.mxu0 %v1828
      %2062 = vmatprep.mubr.bf16.mxu0 %v1339
      %2063 = vmatmul.mubr.bf16.gmra.mxu0 %v1338
      %v2064 = vpop.f32.mrf.mxu0
      %v2065 = vadd.f32 %v2016, %v2064
      %v2066 = vpop.f32.mrf.mxu0
      %v2067 = vpop.f32.mrf.mxu0
      %v2068 = vadd.f32 %v2019, %v2067
      %v2069 = vpop.f32.mrf.mxu0
      %2070 = vmatprep.mubr.bf16.mxu0 %v1345
      %2071 = vmatmul.mubr.bf16.gmra.mxu0 %v1344
      %v2072 = vpop.f32.mrf.mxu0
      %v2073 = vadd.f32 %v2024, %v2072
      %v2074 = vpop.f32.mrf.mxu0
      %v2075 = vpop.f32.mrf.mxu0
      %v2076 = vadd.f32 %v2027, %v2075
      %v2077 = vpop.f32.mrf.mxu0
      %2078 = vdwg.mxu0
      %2079 = vmatprep.subr.bf16.mxu0 0
      %2080 = vmatpush1.bf16.msra.mxu0 %v1843
      %2081 = vmatprep.subr.bf16.mxu0 0
      %2082 = vmatpush1.bf16.msra.mxu0 %v1842
      %2083 = vmatprep.subr.bf16.mxu0 0
      %2084 = vmatpush1.bf16.msra.mxu0 %v1841
      %2085 = vmatprep.subr.bf16.mxu0 0
      %2086 = vmatpush1.bf16.msra.mxu0 %v1840
      %2087 = vmatprep.subr.bf16.mxu0 0
      %2088 = vmatpush1.bf16.msra.mxu0 %v1839
      %2089 = vmatprep.subr.bf16.mxu0 0
      %2090 = vmatpush1.bf16.msra.mxu0 %v1838
      %2091 = vmatprep.subr.bf16.mxu0 0
      %2092 = vmatpush1.bf16.msra.mxu0 %v1837
      %2093 = vmatprep.subr.bf16.mxu0 0
      %2094 = vmatpush1.bf16.msra.mxu0 %v1836
      %2095 = vmatprep.subr.bf16.mxu0 0
      %2096 = vmatpush2.bf16.msra.mxu0 %v1851
      %2097 = vmatprep.subr.bf16.mxu0 0
      %2098 = vmatpush2.bf16.msra.mxu0 %v1850
      %2099 = vmatprep.subr.bf16.mxu0 0
      %2100 = vmatpush2.bf16.msra.mxu0 %v1849
      %2101 = vmatprep.subr.bf16.mxu0 0
      %2102 = vmatpush2.bf16.msra.mxu0 %v1848
      %2103 = vmatprep.subr.bf16.mxu0 0
      %2104 = vmatpush2.bf16.msra.mxu0 %v1847
      %2105 = vmatprep.subr.bf16.mxu0 0
      %2106 = vmatpush2.bf16.msra.mxu0 %v1846
      %2107 = vmatprep.subr.bf16.mxu0 0
      %2108 = vmatpush2.bf16.msra.mxu0 %v1845
      %2109 = vmatprep.subr.bf16.mxu0 0
      %2110 = vmatpush2.bf16.msra.mxu0 %v1844
      %2111 = vmatprep.mubr.bf16.mxu0 %v1341
      %2112 = vmatmul.mubr.bf16.gmra.mxu0 %v1340
      %v2113 = vpop.f32.mrf.mxu0
      %v2114 = vadd.f32 %v2065, %v2113
      %v2115 = vpop.f32.mrf.mxu0
      %v2116 = vpop.f32.mrf.mxu0
      %v2117 = vadd.f32 %v2068, %v2116
      %v2118 = vpop.f32.mrf.mxu0
      %2119 = vmatprep.mubr.bf16.mxu0 %v1347
      %2120 = vmatmul.mubr.bf16.gmra.mxu0 %v1346
      %v2121 = vpop.f32.mrf.mxu0
      %v2122 = vadd.f32 %v2073, %v2121
      %v2123 = vpop.f32.mrf.mxu0
      %v2124 = vpop.f32.mrf.mxu0
      %v2125 = vadd.f32 %v2076, %v2124
      %v2126 = vpop.f32.mrf.mxu0
      %2127 = vdwg.mxu0
      %2128 = vmatprep.subr.bf16.mxu0 0
      %2129 = vmatpush1.bf16.msra.mxu0 %v1859
      %2130 = vmatprep.subr.bf16.mxu0 0
      %2131 = vmatpush1.bf16.msra.mxu0 %v1858
      %2132 = vmatprep.subr.bf16.mxu0 0
      %2133 = vmatpush1.bf16.msra.mxu0 %v1857
      %2134 = vmatprep.subr.bf16.mxu0 0
      %2135 = vmatpush1.bf16.msra.mxu0 %v1856
      %2136 = vmatprep.subr.bf16.mxu0 0
      %2137 = vmatpush1.bf16.msra.mxu0 %v1855
      %2138 = vmatprep.subr.bf16.mxu0 0
      %2139 = vmatpush1.bf16.msra.mxu0 %v1854
      %2140 = vmatprep.subr.bf16.mxu0 0
      %2141 = vmatpush1.bf16.msra.mxu0 %v1853
      %2142 = vmatprep.subr.bf16.mxu0 0
      %2143 = vmatpush1.bf16.msra.mxu0 %v1852
      %2144 = vmatprep.subr.bf16.mxu0 0
      %2145 = vmatpush2.bf16.msra.mxu0 0
      %2146 = vmatprep.subr.bf16.mxu0 0
      %2147 = vmatpush2.bf16.msra.mxu0 0
      %2148 = vmatprep.subr.bf16.mxu0 0
      %2149 = vmatpush2.bf16.msra.mxu0 0
      %2150 = vmatprep.subr.bf16.mxu0 0
      %2151 = vmatpush2.bf16.msra.mxu0 0
      %2152 = vmatprep.subr.bf16.mxu0 0
      %2153 = vmatpush2.bf16.msra.mxu0 0
      %2154 = vmatprep.subr.bf16.mxu0 0
      %2155 = vmatpush2.bf16.msra.mxu0 0
      %2156 = vmatprep.subr.bf16.mxu0 0
      %2157 = vmatpush2.bf16.msra.mxu0 0
      %2158 = vmatprep.subr.bf16.mxu0 0
      %2159 = vmatpush2.bf16.msra.mxu0 0
      %2160 = vmatprep.mubr.bf16.mxu0 0
      %2161 = vmatmul.mubr.bf16.gmra.mxu0 %v1342
      %v2162 = vpop.f32.mrf.mxu0
      %v2163 = vadd.f32 %v2114, %v2162
      %v2164 = vpop.f32.mrf.mxu0
      %v2165 = vpop.f32.mrf.mxu0
      %v2166 = vadd.f32 %v2117, %v2165
      %v2167 = vpop.f32.mrf.mxu0
      %2168 = vmatprep.mubr.bf16.mxu0 0
      %2169 = vmatmul.mubr.bf16.gmra.mxu0 %v1348
      %v2170 = vpop.f32.mrf.mxu0
      %v2171 = vadd.f32 %v2122, %v2170
      %v2172 = vpop.f32.mrf.mxu0
      %v2173 = vpop.f32.mrf.mxu0
      %v2174 = vadd.f32 %v2125, %v2173
      %v2175 = vpop.f32.mrf.mxu0
      %2176 = vdwg.mxu0
      %v2177 = vmax.f32 %v2163, 0.0
      %v2178 = vmax.f32 %v2166, 0.0
      %v2179 = vmax.f32 %v2171, 0.0
      %v2180 = vmax.f32 %v2174, 0.0
      %2181 = vst [vmem:[%s224] sm:$0xff] %v2177
      %2182 = vst [vmem:[%s224 + $0x8] sm:$0xff] %v2178
      %2183 = vst [vmem:[%s224 + $0x10] sm:$0xff] %v2179
      %2184 = vst [vmem:[%s224 + $0x18] sm:$0xff] %v2180
      %p2185 = scmp.lt.s32.totalorder %s16, 3
      %s2186 = scalar_select %p2185, %s16, 3
      %s2187 = smul.addr %s2186, 4
      %s2188 = smul.addr %s2187, 8
      %s2189 = scalar_lea.vmem %s5, %s2188
      // Predicated region
      $region41: #{down_forward.1} parent=39 // pred_check
        %p2190 = pneg %p144
      $region42: #{down_forward.1} parent=39 // pred_check_branch
        %2192 = sbr.rel (%p2190) target = $region44
      $region43: #{down_forward.1} parent=39 // pred_region
        _
      $region44: #{down_forward.1} parent=39 // pred_fallthru
        _
    $region40: #{down_forward.1} parent=5 // pred_fallthru
      _
    %p2193 = scmp.le.s32.totalorder 2, %s11
    // Predicated region
    $region45: #{down_forward.1} parent=5 // pred_check
      %p2194 = pneg %p2193
    $region46: #{down_forward.1} parent=5 // pred_check_branch
      %2196 = sbr.rel (%p2194) target = $region48
    $region47: #{down_forward.1} parent=5 // pred_region
      %s2197 = ssub.s32 %s11, 2
      // Predicated region
      $region49: #{down_forward.1} parent=47 // pred_check
        %p2198 = pneg %p150
      $region50: #{down_forward.1} parent=47 // pred_check_branch
        %2200 = sbr.rel (%p2198) target = $region52
      $region51: #{down_forward.1} parent=47 // pred_region
        %p2201 = scmp.lt.s32.totalorder %s17, 3
        %s2202 = scalar_select %p2201, %s17, 3
        %s2203 = smul.addr %s2202, 4
        %s2204 = smul.addr %s2203, 8
        %s2205 = scalar_lea.vmem %s5, %s2204
      $region52: #{down_forward.1} parent=47 // pred_fallthru
        _
    $region48: #{down_forward.1} parent=5 // pred_fallthru
      _
  $region6: #{down_forward.1} parent=0 // loop_footer
    %s15 = sadd.s32 1, %s11
  $region7: #{down_forward.1} parent=0 // loop_footer_branch
    %10 = sbr.rel target = $region3
  $region8: #{down_forward.1} parent=0 // loop_exit
    _

</llo_original>
